<compile_context>
chip_gen: v6e
topology: v6e:2x2x1
jax: 0.10.0
libtpu: 0.0.40
codegen_flags: <defaults>
</compile_context>

<pallas_src>
import functools

import jax
import jax.numpy as jnp
from jax import lax
from jax.experimental import pallas as pl
from jax.experimental.pallas import tpu as pltpu


def _round_up(x, m):
    return ((x + m - 1) // m) * m


# ----------------------------------------------------------------------------
# Kernel factory.
#   x_ref    : (Tc, Bp, Gxp)         streamed input chunk
#   wcat_ref : (L, Kmax, Hp)         per-layer [Wx ; Wh] (zero-padded), VMEM resident
#   bcat_ref : (L, 1, Hp)            per-layer bx + bh
#   wf_ref   : (Hp, Np)              final FC weight
#   bf_ref   : (1, Np)               final FC bias
#   hs_ref   : (L, Tc, Bp, Hp)       OUTPUT chunk: per-layer hidden states
#   y_ref    : (Tc, Bp, Np)          OUTPUT chunk: FC outputs
#   hcar_ref : (L, Bp, Hp)           persistent scratch: hidden carry across chunks
# ----------------------------------------------------------------------------
def _make_kernel(num_layers, gxp, hp, np_):
    def kernel(x_ref, wcat_ref, bcat_ref, wf_ref, bf_ref, hs_ref, y_ref, hcar_ref):
        tc, bp, _ = x_ref.shape

        # Zero the per-layer hidden carries once, at the first T-chunk.
        @pl.when(pl.program_id(0) == 0)
        def _():
            hcar_ref[...] = jnp.zeros_like(hcar_ref)

        # Partial unroll for long chunks, full unroll for short ones.
        unroll = True if tc <= 16 else 8

        for l in range(num_layers):                      # static layer loop
            xw = gxp if l == 0 else hp                   # per-layer x-part width
            # Hoist loop-invariant weight slice and bias broadcast out of the time loop.
            w_l = wcat_ref[l, :xw + hp, :]               # (xw+Hp, Hp)
            b_l = jnp.broadcast_to(bcat_ref[l], (bp, hp))
            h0 = hcar_ref[l]                             # (Bp, Hp)

            def step(t, h, l=l, w_l=w_l, b_l=b_l):
                if l == 0:
                    x_t = x_ref[t]                       # (Bp, Gxp)
                else:
                    x_t = hs_ref[l - 1, t]               # (Bp, Hp)
                # LHS built in vregs; single fused MXU matmul per step.
                xh = jnp.concatenate([x_t, h], axis=-1)  # (Bp, xw+Hp)
                pre = jnp.dot(xh, w_l, preferred_element_type=jnp.float32) + b_l
                h_new = jnp.tanh(pre)                    # (Bp, Hp)
                hs_ref[l, t] = h_new                     # lane-dense VMEM store
                return h_new                             # carry stays in vregs

            h_fin = lax.fori_loop(0, tc, step, h0, unroll=unroll)
            hcar_ref[l] = h_fin                          # persist across chunks

        # Batched final FC over the whole chunk (one big matmul, not Tc tiny ones).
        h_last = hs_ref[num_layers - 1].reshape(tc * bp, hp)
        y = jnp.dot(h_last, wf_ref[...], preferred_element_type=jnp.float32) + bf_ref[...]
        y_ref[...] = y.reshape(tc, bp, np_)

    return kernel


# ----------------------------------------------------------------------------
# Parameter init (deterministic, PyTorch nn.Linear-style U(-1/sqrt(fan_in), ...)).
# ----------------------------------------------------------------------------
def _init_linear(key, fan_in, fan_out):
    kw, kb = jax.random.split(key)
    bound = 1.0 / jnp.sqrt(fan_in)
    w = jax.random.uniform(kw, (fan_in, fan_out), jnp.float32, -bound, bound)
    b = jax.random.uniform(kb, (fan_out,), jnp.float32, -bound, bound)
    return w, b


def init_params(key, input_size, hidden_size, output_size, num_layers):
    params = {"layers": []}
    for i in range(num_layers):
        d_in = input_size if i == 0 else hidden_size
        key, k1, k2 = jax.random.split(key, 3)
        wx, bx = _init_linear(k1, d_in, hidden_size)          # input2h
        wh, bh = _init_linear(k2, hidden_size, hidden_size)   # h2h
        params["layers"].append({"wx": wx, "bx": bx, "wh": wh, "bh": bh})
    key, kf = jax.random.split(key)
    wf, bf = _init_linear(kf, hidden_size, output_size)
    params["fc"] = {"w": wf, "b": bf}
    return params


# ----------------------------------------------------------------------------
# One-time weight packing (outside the per-call jit: params are call-invariant).
# ----------------------------------------------------------------------------
def pack_params(params):
    f32 = jnp.float32
    layers = params["layers"]
    num_layers = len(layers)
    input_size = layers[0]["wx"].shape[0]
    hidden_size = layers[0]["wh"].shape[0]
    output_size = params["fc"]["w"].shape[1]

    hp = _round_up(hidden_size, 128)
    gxp = _round_up(input_size, 128)
    np_ = _round_up(output_size, 128)
    kmax = max(gxp, hp) + hp

    wcat = jnp.zeros((num_layers, kmax, hp), f32)
    bcat = jnp.zeros((num_layers, 1, hp), f32)
    for l, lp in enumerate(layers):
        xw = gxp if l == 0 else hp
        d_in = lp["wx"].shape[0]
        wcat = wcat.at[l, :d_in, :hidden_size].set(lp["wx"])
        wcat = wcat.at[l, xw:xw + hidden_size, :hidden_size].set(lp["wh"])
        bcat = bcat.at[l, 0, :hidden_size].set(lp["bx"] + lp["bh"])

    wf = jnp.zeros((hp, np_), f32).at[:hidden_size, :output_size].set(params["fc"]["w"])
    bf = jnp.zeros((1, np_), f32).at[0, :output_size].set(params["fc"]["b"])
    return {"wcat": wcat, "bcat": bcat, "wf": wf, "bf": bf}


# ----------------------------------------------------------------------------
# Forward pass (recurrent_module='VanillaRNN', hidden_activation_function=Identity).
# TODO(synk): GRULayer / LightGRULayer / LSTMLayer recurrent_module variants and a
# non-Identity hidden_activation_function are not implemented here.
# ----------------------------------------------------------------------------
@functools.partial(jax.jit, static_argnames=("hidden_size", "output_size"))
def recurrent_network_forward(packed, x, *, hidden_size, output_size):
    f32 = jnp.float32
    seq_len, batch, input_size = x.shape
    wcat, bcat, wf, bf = packed["wcat"], packed["bcat"], packed["wf"], packed["bf"]
    num_layers, kmax, hp = wcat.shape
    np_ = wf.shape[1]
    gxp = _round_up(input_size, 128)
    bp = _round_up(max(batch, 8), 8)

    # ---- choose the streaming T-chunk against a VMEM budget (v5e/v6e/v7x-safe) ----
    stream_per_t = 4 * bp * (gxp + num_layers * hp + np_)   # bytes streamed per timestep
    budget = 12 << 20                                       # ~12 MiB per chunk buffer set
    tc = int(max(1, min(budget // max(stream_per_t, 1), 256, seq_len)))
    tp = _round_up(seq_len, tc)
    n_chunks = tp // tc

    # zero-padded, lane/sublane-aligned input (seq padded to a multiple of tc)
    x_pad = jnp.zeros((tp, bp, gxp), f32).at[:seq_len, :batch, :input_size].set(
        x.astype(f32))

    # explicit VMEM budget: resident weights + carries + double-buffered chunk streams
    weight_bytes = 4 * (wcat.size + bcat.size + wf.size + bf.size)
    carry_bytes = 4 * num_layers * bp * hp
    chunk_bytes = tc * stream_per_t
    vmem_limit = int(1.25 * (weight_bytes + carry_bytes + 2 * chunk_bytes)) + (2 << 20)
    vmem_limit = int(min(max(vmem_limit, 8 << 20), 96 << 20))

    kernel = _make_kernel(num_layers, gxp, hp, np_)

    hs, y = pl.pallas_call(
        kernel,
        grid=(n_chunks,),
        out_shape=(
            jax.ShapeDtypeStruct((num_layers, tp, bp, hp), f32),
            jax.ShapeDtypeStruct((tp, bp, np_), f32),
        ),
        in_specs=[
            pl.BlockSpec((tc, bp, gxp), lambda t: (t, 0, 0)),           # streamed x chunk
            pl.BlockSpec((num_layers, kmax, hp), lambda t: (0, 0, 0)),  # resident weights
            pl.BlockSpec((num_layers, 1, hp), lambda t: (0, 0, 0)),
            pl.BlockSpec((hp, np_), lambda t: (0, 0)),
            pl.BlockSpec((1, np_), lambda t: (0, 0)),
        ],
        out_specs=(
            pl.BlockSpec((num_layers, tc, bp, hp), lambda t: (0, t, 0, 0)),  # streamed hs
            pl.BlockSpec((tc, bp, np_), lambda t: (t, 0, 0)),                # streamed y
        ),
        scratch_shapes=[pltpu.VMEM((num_layers, bp, hp), f32)],              # hidden carry
        compiler_params=pltpu.CompilerParams(
            dimension_semantics=("arbitrary",),   # sequential: carries state across chunks
            vmem_limit_bytes=vmem_limit,
        ),
    )(x_pad, wcat, bcat, wf, bf)

    hidden_stack = hs[:, :seq_len, :batch, :hidden_size]    # (L, T, B, H)
    outputs = y[:seq_len, :batch, :output_size]             # (T, B, output_size)

    # hidden_activation_function = Identity -> post-act == pre-act.
    return outputs, (hidden_stack, hidden_stack)


# ----------------------------------------------------------------------------
# Pure-JAX reference for correctness checking.
# ----------------------------------------------------------------------------
def reference_forward(params, x):
    hi = lax.Precision.HIGHEST
    layer_output = x
    pres = []
    for lp in params["layers"]:
        def step(h, x_t, lp=lp):
            h_new = jnp.tanh(
                jnp.dot(x_t, lp["wx"], precision=hi) + lp["bx"]
                + jnp.dot(h, lp["wh"], precision=hi) + lp["bh"])
            return h_new, h_new

        h0 = jnp.zeros((x.shape[1], lp["wh"].shape[0]), jnp.float32)
        _, outs = lax.scan(step, h0, layer_output)
        pres.append(outs)
        layer_output = outs
    stack = jnp.stack(pres, axis=0)
    outputs = jnp.dot(layer_output, params["fc"]["w"], precision=hi) + params["fc"]["b"]
    return outputs, (stack, stack)


if __name__ == "__main__":
    # Small shapes consistent with the module's forward: (seq_len, batch, input_size).
    seq_len, batch, input_size = 8, 2, 4
    hidden_size, output_size, num_layers = 32, 8, 2

    key = jax.random.PRNGKey(0)
    kp, kx = jax.random.split(key)
    params = init_params(kp, input_size, hidden_size, output_size, num_layers)
    x = jax.random.normal(kx, (seq_len, batch, input_size), jnp.float32)

    packed = pack_params(params)   # one-time host-side weight packing

    outputs, (post_stack, pre_stack) = recurrent_network_forward(
        packed, x, hidden_size=hidden_size, output_size=output_size)
    jax.block_until_ready(outputs)
    jax.block_until_ready(post_stack)
    jax.block_until_ready(pre_stack)

    ref_out, (ref_post, ref_pre) = reference_forward(params, x)
    assert outputs.shape == (seq_len, batch, output_size)
    assert post_stack.shape == (num_layers, seq_len, batch, hidden_size)
    assert pre_stack.shape == (num_layers, seq_len, batch, hidden_size)
    assert jnp.allclose(outputs, ref_out, atol=1e-4, rtol=1e-4)
    assert jnp.allclose(post_stack, ref_post, atol=1e-4, rtol=1e-4)
    assert jnp.allclose(pre_stack, ref_pre, atol=1e-4, rtol=1e-4)

    print("KERNEL_OK")
</pallas_src>

<mosaic_0001>
module attributes {stable_mosaic.version = 11 : i64} {
  func.func @kernel(%arg0: i32, %arg1: memref<8x8x128xf32, #tpu.memory_space<vmem>>, %arg2: memref<2x256x128xf32, #tpu.memory_space<vmem>>, %arg3: memref<2x1x128xf32, #tpu.memory_space<vmem>>, %arg4: memref<128x128xf32, #tpu.memory_space<vmem>>, %arg5: memref<1x128xf32, #tpu.memory_space<vmem>>, %arg6: memref<2x8x8x128xf32, #tpu.memory_space<vmem>>, %arg7: memref<8x8x128xf32, #tpu.memory_space<vmem>>, %arg8: memref<2x8x128xf32, #tpu.memory_space<vmem>>) attributes {dimension_semantics = [#tpu.dimension_semantics<arbitrary>], iteration_bounds = array<i64: 1>, scalar_prefetch = 0 : i64, scratch_operands = 1 : i64, tpu.core_type = #tpu.core_type<tc>, window_params = [{transform_indices = @transform_0, window_bounds = array<i64: 8, 8, 128>}, {pipeline_mode = #tpu.pipeline_mode<synchronous>, transform_indices = @transform_1, window_bounds = array<i64: 2, 256, 128>}, {pipeline_mode = #tpu.pipeline_mode<synchronous>, transform_indices = @transform_2, window_bounds = array<i64: 2, 1, 128>}, {pipeline_mode = #tpu.pipeline_mode<synchronous>, transform_indices = @transform_3, window_bounds = array<i64: 128, 128>}, {pipeline_mode = #tpu.pipeline_mode<synchronous>, transform_indices = @transform_4, window_bounds = array<i64: 1, 128>}, {transform_indices = @transform_5, window_bounds = array<i64: 2, 8, 8, 128>}, {transform_indices = @transform_6, window_bounds = array<i64: 8, 8, 128>}]} {
    %c0_i32 = arith.constant 0 : i32
    %0 = arith.cmpi eq, %arg0, %c0_i32 : i32
    %1 = arith.extui %0 : i1 to i32
    %c0_i32_0 = arith.constant 0 : i32
    %2 = arith.cmpi ne, %1, %c0_i32_0 : i32
    scf.if %2 {
      %cst_148 = arith.constant 0.000000e+00 : f32
      %211 = vector.broadcast %cst_148 : f32 to vector<2x8x128xf32>
      %c0_149 = arith.constant 0 : index
      %c0_150 = arith.constant 0 : index
      %c0_151 = arith.constant 0 : index
      %212 = vector.load %arg8[%c0_149, %c0_150, %c0_151] : memref<2x8x128xf32, #tpu.memory_space<vmem>>, vector<2x8x128xf32>
      tpu.vector_store %arg8[%c0_149, %c0_150, %c0_151], %211 {strides = array<i32>} : memref<2x8x128xf32, #tpu.memory_space<vmem>>, vector<2x8x128xf32>,
    } else {
    }
    %c0 = arith.constant 0 : index
    %c0_1 = arith.constant 0 : index
    %c0_2 = arith.constant 0 : index
    %3 = vector.load %arg2[%c0, %c0_1, %c0_2] : memref<2x256x128xf32, #tpu.memory_space<vmem>>, vector<1x256x128xf32>
    %4 = vector.shape_cast %3 : vector<1x256x128xf32> to vector<256x128xf32>
    %c0_3 = arith.constant 0 : index
    %c0_4 = arith.constant 0 : index
    %c0_5 = arith.constant 0 : index
    %5 = vector.load %arg3[%c0_3, %c0_4, %c0_5] : memref<2x1x128xf32, #tpu.memory_space<vmem>>, vector<1x1x128xf32>
    %6 = vector.shape_cast %5 : vector<1x1x128xf32> to vector<1x128xf32>
    %7 = vector.shape_cast %6 : vector<1x128xf32> to vector<1x128xf32>
    %8 = vector.broadcast %7 : vector<1x128xf32> to vector<8x128xf32>
    %c0_6 = arith.constant 0 : index
    %c0_7 = arith.constant 0 : index
    %c0_8 = arith.constant 0 : index
    %9 = vector.load %arg8[%c0_6, %c0_7, %c0_8] : memref<2x8x128xf32, #tpu.memory_space<vmem>>, vector<1x8x128xf32>
    %10 = vector.shape_cast %9 : vector<1x8x128xf32> to vector<8x128xf32>
    %c0_i32_9 = arith.constant 0 : i32
    %11 = arith.index_cast %c0_i32_9 : i32 to index
    %c0_10 = arith.constant 0 : index
    %c0_11 = arith.constant 0 : index
    %12 = vector.load %arg1[%11, %c0_10, %c0_11] : memref<8x8x128xf32, #tpu.memory_space<vmem>>, vector<1x8x128xf32>
    %13 = vector.shape_cast %12 : vector<1x8x128xf32> to vector<8x128xf32>
    %14 = tpu.concatenate %13, %10 in 1 : vector<8x128xf32>, vector<8x128xf32> -> vector<8x256xf32>
    %cst = arith.constant dense<0.000000e+00> : vector<8x128xf32>
    %15 = tpu.matmul %14, %4, %cst {dimension_numbers = #tpu.dot_dimension_numbers<[1], [0], [0], [1], [0, 0, 1, 1], [], []>} : vector<8x256xf32>, vector<256x128xf32>, vector<8x128xf32> -> vector<8x128xf32>
    %16 = arith.addf %15, %8 : vector<8x128xf32>
    %17 = math.tanh %16 : vector<8x128xf32>
    %c0_12 = arith.constant 0 : index
    %18 = arith.index_cast %c0_i32_9 : i32 to index
    %c0_13 = arith.constant 0 : index
    %c0_14 = arith.constant 0 : index
    %19 = vector.load %arg6[%c0_12, %18, %c0_13, %c0_14] : memref<2x8x8x128xf32, #tpu.memory_space<vmem>>, vector<1x1x8x128xf32>
    %20 = vector.shape_cast %19 : vector<1x1x8x128xf32> to vector<8x128xf32>
    %21 = vector.shape_cast %17 : vector<8x128xf32> to vector<1x1x8x128xf32>
    tpu.vector_store %arg6[%c0_12, %18, %c0_13, %c0_14], %21 {strides = array<i32>} : memref<2x8x8x128xf32, #tpu.memory_space<vmem>>, vector<1x1x8x128xf32>,
    %c1_i32 = arith.constant 1 : i32
    %22 = arith.index_cast %c1_i32 : i32 to index
    %c0_15 = arith.constant 0 : index
    %c0_16 = arith.constant 0 : index
    %23 = vector.load %arg1[%22, %c0_15, %c0_16] : memref<8x8x128xf32, #tpu.memory_space<vmem>>, vector<1x8x128xf32>
    %24 = vector.shape_cast %23 : vector<1x8x128xf32> to vector<8x128xf32>
    %25 = tpu.concatenate %24, %17 in 1 : vector<8x128xf32>, vector<8x128xf32> -> vector<8x256xf32>
    %cst_17 = arith.constant dense<0.000000e+00> : vector<8x128xf32>
    %26 = tpu.matmul %25, %4, %cst_17 {dimension_numbers = #tpu.dot_dimension_numbers<[1], [0], [0], [1], [0, 0, 1, 1], [], []>} : vector<8x256xf32>, vector<256x128xf32>, vector<8x128xf32> -> vector<8x128xf32>
    %27 = arith.addf %26, %8 : vector<8x128xf32>
    %28 = math.tanh %27 : vector<8x128xf32>
    %c0_18 = arith.constant 0 : index
    %29 = arith.index_cast %c1_i32 : i32 to index
    %c0_19 = arith.constant 0 : index
    %c0_20 = arith.constant 0 : index
    %30 = vector.load %arg6[%c0_18, %29, %c0_19, %c0_20] : memref<2x8x8x128xf32, #tpu.memory_space<vmem>>, vector<1x1x8x128xf32>
    %31 = vector.shape_cast %30 : vector<1x1x8x128xf32> to vector<8x128xf32>
    %32 = vector.shape_cast %28 : vector<8x128xf32> to vector<1x1x8x128xf32>
    tpu.vector_store %arg6[%c0_18, %29, %c0_19, %c0_20], %32 {strides = array<i32>} : memref<2x8x8x128xf32, #tpu.memory_space<vmem>>, vector<1x1x8x128xf32>,
    %c2_i32 = arith.constant 2 : i32
    %33 = arith.index_cast %c2_i32 : i32 to index
    %c0_21 = arith.constant 0 : index
    %c0_22 = arith.constant 0 : index
    %34 = vector.load %arg1[%33, %c0_21, %c0_22] : memref<8x8x128xf32, #tpu.memory_space<vmem>>, vector<1x8x128xf32>
    %35 = vector.shape_cast %34 : vector<1x8x128xf32> to vector<8x128xf32>
    %36 = tpu.concatenate %35, %28 in 1 : vector<8x128xf32>, vector<8x128xf32> -> vector<8x256xf32>
    %cst_23 = arith.constant dense<0.000000e+00> : vector<8x128xf32>
    %37 = tpu.matmul %36, %4, %cst_23 {dimension_numbers = #tpu.dot_dimension_numbers<[1], [0], [0], [1], [0, 0, 1, 1], [], []>} : vector<8x256xf32>, vector<256x128xf32>, vector<8x128xf32> -> vector<8x128xf32>
    %38 = arith.addf %37, %8 : vector<8x128xf32>
    %39 = math.tanh %38 : vector<8x128xf32>
    %c0_24 = arith.constant 0 : index
    %40 = arith.index_cast %c2_i32 : i32 to index
    %c0_25 = arith.constant 0 : index
    %c0_26 = arith.constant 0 : index
    %41 = vector.load %arg6[%c0_24, %40, %c0_25, %c0_26] : memref<2x8x8x128xf32, #tpu.memory_space<vmem>>, vector<1x1x8x128xf32>
    %42 = vector.shape_cast %41 : vector<1x1x8x128xf32> to vector<8x128xf32>
    %43 = vector.shape_cast %39 : vector<8x128xf32> to vector<1x1x8x128xf32>
    tpu.vector_store %arg6[%c0_24, %40, %c0_25, %c0_26], %43 {strides = array<i32>} : memref<2x8x8x128xf32, #tpu.memory_space<vmem>>, vector<1x1x8x128xf32>,
    %c3_i32 = arith.constant 3 : i32
    %44 = arith.index_cast %c3_i32 : i32 to index
    %c0_27 = arith.constant 0 : index
    %c0_28 = arith.constant 0 : index
    %45 = vector.load %arg1[%44, %c0_27, %c0_28] : memref<8x8x128xf32, #tpu.memory_space<vmem>>, vector<1x8x128xf32>
    %46 = vector.shape_cast %45 : vector<1x8x128xf32> to vector<8x128xf32>
    %47 = tpu.concatenate %46, %39 in 1 : vector<8x128xf32>, vector<8x128xf32> -> vector<8x256xf32>
    %cst_29 = arith.constant dense<0.000000e+00> : vector<8x128xf32>
    %48 = tpu.matmul %47, %4, %cst_29 {dimension_numbers = #tpu.dot_dimension_numbers<[1], [0], [0], [1], [0, 0, 1, 1], [], []>} : vector<8x256xf32>, vector<256x128xf32>, vector<8x128xf32> -> vector<8x128xf32>
    %49 = arith.addf %48, %8 : vector<8x128xf32>
    %50 = math.tanh %49 : vector<8x128xf32>
    %c0_30 = arith.constant 0 : index
    %51 = arith.index_cast %c3_i32 : i32 to index
    %c0_31 = arith.constant 0 : index
    %c0_32 = arith.constant 0 : index
    %52 = vector.load %arg6[%c0_30, %51, %c0_31, %c0_32] : memref<2x8x8x128xf32, #tpu.memory_space<vmem>>, vector<1x1x8x128xf32>
    %53 = vector.shape_cast %52 : vector<1x1x8x128xf32> to vector<8x128xf32>
    %54 = vector.shape_cast %50 : vector<8x128xf32> to vector<1x1x8x128xf32>
    tpu.vector_store %arg6[%c0_30, %51, %c0_31, %c0_32], %54 {strides = array<i32>} : memref<2x8x8x128xf32, #tpu.memory_space<vmem>>, vector<1x1x8x128xf32>,
    %c4_i32 = arith.constant 4 : i32
    %55 = arith.index_cast %c4_i32 : i32 to index
    %c0_33 = arith.constant 0 : index
    %c0_34 = arith.constant 0 : index
    %56 = vector.load %arg1[%55, %c0_33, %c0_34] : memref<8x8x128xf32, #tpu.memory_space<vmem>>, vector<1x8x128xf32>
    %57 = vector.shape_cast %56 : vector<1x8x128xf32> to vector<8x128xf32>
    %58 = tpu.concatenate %57, %50 in 1 : vector<8x128xf32>, vector<8x128xf32> -> vector<8x256xf32>
    %cst_35 = arith.constant dense<0.000000e+00> : vector<8x128xf32>
    %59 = tpu.matmul %58, %4, %cst_35 {dimension_numbers = #tpu.dot_dimension_numbers<[1], [0], [0], [1], [0, 0, 1, 1], [], []>} : vector<8x256xf32>, vector<256x128xf32>, vector<8x128xf32> -> vector<8x128xf32>
    %60 = arith.addf %59, %8 : vector<8x128xf32>
    %61 = math.tanh %60 : vector<8x128xf32>
    %c0_36 = arith.constant 0 : index
    %62 = arith.index_cast %c4_i32 : i32 to index
    %c0_37 = arith.constant 0 : index
    %c0_38 = arith.constant 0 : index
    %63 = vector.load %arg6[%c0_36, %62, %c0_37, %c0_38] : memref<2x8x8x128xf32, #tpu.memory_space<vmem>>, vector<1x1x8x128xf32>
    %64 = vector.shape_cast %63 : vector<1x1x8x128xf32> to vector<8x128xf32>
    %65 = vector.shape_cast %61 : vector<8x128xf32> to vector<1x1x8x128xf32>
    tpu.vector_store %arg6[%c0_36, %62, %c0_37, %c0_38], %65 {strides = array<i32>} : memref<2x8x8x128xf32, #tpu.memory_space<vmem>>, vector<1x1x8x128xf32>,
    %c5_i32 = arith.constant 5 : i32
    %66 = arith.index_cast %c5_i32 : i32 to index
    %c0_39 = arith.constant 0 : index
    %c0_40 = arith.constant 0 : index
    %67 = vector.load %arg1[%66, %c0_39, %c0_40] : memref<8x8x128xf32, #tpu.memory_space<vmem>>, vector<1x8x128xf32>
    %68 = vector.shape_cast %67 : vector<1x8x128xf32> to vector<8x128xf32>
    %69 = tpu.concatenate %68, %61 in 1 : vector<8x128xf32>, vector<8x128xf32> -> vector<8x256xf32>
    %cst_41 = arith.constant dense<0.000000e+00> : vector<8x128xf32>
    %70 = tpu.matmul %69, %4, %cst_41 {dimension_numbers = #tpu.dot_dimension_numbers<[1], [0], [0], [1], [0, 0, 1, 1], [], []>} : vector<8x256xf32>, vector<256x128xf32>, vector<8x128xf32> -> vector<8x128xf32>
    %71 = arith.addf %70, %8 : vector<8x128xf32>
    %72 = math.tanh %71 : vector<8x128xf32>
    %c0_42 = arith.constant 0 : index
    %73 = arith.index_cast %c5_i32 : i32 to index
    %c0_43 = arith.constant 0 : index
    %c0_44 = arith.constant 0 : index
    %74 = vector.load %arg6[%c0_42, %73, %c0_43, %c0_44] : memref<2x8x8x128xf32, #tpu.memory_space<vmem>>, vector<1x1x8x128xf32>
    %75 = vector.shape_cast %74 : vector<1x1x8x128xf32> to vector<8x128xf32>
    %76 = vector.shape_cast %72 : vector<8x128xf32> to vector<1x1x8x128xf32>
    tpu.vector_store %arg6[%c0_42, %73, %c0_43, %c0_44], %76 {strides = array<i32>} : memref<2x8x8x128xf32, #tpu.memory_space<vmem>>, vector<1x1x8x128xf32>,
    %c6_i32 = arith.constant 6 : i32
    %77 = arith.index_cast %c6_i32 : i32 to index
    %c0_45 = arith.constant 0 : index
    %c0_46 = arith.constant 0 : index
    %78 = vector.load %arg1[%77, %c0_45, %c0_46] : memref<8x8x128xf32, #tpu.memory_space<vmem>>, vector<1x8x128xf32>
    %79 = vector.shape_cast %78 : vector<1x8x128xf32> to vector<8x128xf32>
    %80 = tpu.concatenate %79, %72 in 1 : vector<8x128xf32>, vector<8x128xf32> -> vector<8x256xf32>
    %cst_47 = arith.constant dense<0.000000e+00> : vector<8x128xf32>
    %81 = tpu.matmul %80, %4, %cst_47 {dimension_numbers = #tpu.dot_dimension_numbers<[1], [0], [0], [1], [0, 0, 1, 1], [], []>} : vector<8x256xf32>, vector<256x128xf32>, vector<8x128xf32> -> vector<8x128xf32>
    %82 = arith.addf %81, %8 : vector<8x128xf32>
    %83 = math.tanh %82 : vector<8x128xf32>
    %c0_48 = arith.constant 0 : index
    %84 = arith.index_cast %c6_i32 : i32 to index
    %c0_49 = arith.constant 0 : index
    %c0_50 = arith.constant 0 : index
    %85 = vector.load %arg6[%c0_48, %84, %c0_49, %c0_50] : memref<2x8x8x128xf32, #tpu.memory_space<vmem>>, vector<1x1x8x128xf32>
    %86 = vector.shape_cast %85 : vector<1x1x8x128xf32> to vector<8x128xf32>
    %87 = vector.shape_cast %83 : vector<8x128xf32> to vector<1x1x8x128xf32>
    tpu.vector_store %arg6[%c0_48, %84, %c0_49, %c0_50], %87 {strides = array<i32>} : memref<2x8x8x128xf32, #tpu.memory_space<vmem>>, vector<1x1x8x128xf32>,
    %c7_i32 = arith.constant 7 : i32
    %88 = arith.index_cast %c7_i32 : i32 to index
    %c0_51 = arith.constant 0 : index
    %c0_52 = arith.constant 0 : index
    %89 = vector.load %arg1[%88, %c0_51, %c0_52] : memref<8x8x128xf32, #tpu.memory_space<vmem>>, vector<1x8x128xf32>
    %90 = vector.shape_cast %89 : vector<1x8x128xf32> to vector<8x128xf32>
    %91 = tpu.concatenate %90, %83 in 1 : vector<8x128xf32>, vector<8x128xf32> -> vector<8x256xf32>
    %cst_53 = arith.constant dense<0.000000e+00> : vector<8x128xf32>
    %92 = tpu.matmul %91, %4, %cst_53 {dimension_numbers = #tpu.dot_dimension_numbers<[1], [0], [0], [1], [0, 0, 1, 1], [], []>} : vector<8x256xf32>, vector<256x128xf32>, vector<8x128xf32> -> vector<8x128xf32>
    %93 = arith.addf %92, %8 : vector<8x128xf32>
    %94 = math.tanh %93 : vector<8x128xf32>
    %c0_54 = arith.constant 0 : index
    %95 = arith.index_cast %c7_i32 : i32 to index
    %c0_55 = arith.constant 0 : index
    %c0_56 = arith.constant 0 : index
    %96 = vector.load %arg6[%c0_54, %95, %c0_55, %c0_56] : memref<2x8x8x128xf32, #tpu.memory_space<vmem>>, vector<1x1x8x128xf32>
    %97 = vector.shape_cast %96 : vector<1x1x8x128xf32> to vector<8x128xf32>
    %98 = vector.shape_cast %94 : vector<8x128xf32> to vector<1x1x8x128xf32>
    tpu.vector_store %arg6[%c0_54, %95, %c0_55, %c0_56], %98 {strides = array<i32>} : memref<2x8x8x128xf32, #tpu.memory_space<vmem>>, vector<1x1x8x128xf32>,
    %c8_i32 = arith.constant 8 : i32
    %c0_57 = arith.constant 0 : index
    %c0_58 = arith.constant 0 : index
    %c0_59 = arith.constant 0 : index
    %99 = vector.load %arg8[%c0_57, %c0_58, %c0_59] : memref<2x8x128xf32, #tpu.memory_space<vmem>>, vector<1x8x128xf32>
    %100 = vector.shape_cast %99 : vector<1x8x128xf32> to vector<8x128xf32>
    %101 = vector.shape_cast %94 : vector<8x128xf32> to vector<1x8x128xf32>
    tpu.vector_store %arg8[%c0_57, %c0_58, %c0_59], %101 {strides = array<i32>} : memref<2x8x128xf32, #tpu.memory_space<vmem>>, vector<1x8x128xf32>,
    %c1 = arith.constant 1 : index
    %c0_60 = arith.constant 0 : index
    %c0_61 = arith.constant 0 : index
    %102 = vector.load %arg2[%c1, %c0_60, %c0_61] : memref<2x256x128xf32, #tpu.memory_space<vmem>>, vector<1x256x128xf32>
    %103 = vector.shape_cast %102 : vector<1x256x128xf32> to vector<256x128xf32>
    %c1_62 = arith.constant 1 : index
    %c0_63 = arith.constant 0 : index
    %c0_64 = arith.constant 0 : index
    %104 = vector.load %arg3[%c1_62, %c0_63, %c0_64] : memref<2x1x128xf32, #tpu.memory_space<vmem>>, vector<1x1x128xf32>
    %105 = vector.shape_cast %104 : vector<1x1x128xf32> to vector<1x128xf32>
    %106 = vector.shape_cast %105 : vector<1x128xf32> to vector<1x128xf32>
    %107 = vector.broadcast %106 : vector<1x128xf32> to vector<8x128xf32>
    %c1_65 = arith.constant 1 : index
    %c0_66 = arith.constant 0 : index
    %c0_67 = arith.constant 0 : index
    %108 = vector.load %arg8[%c1_65, %c0_66, %c0_67] : memref<2x8x128xf32, #tpu.memory_space<vmem>>, vector<1x8x128xf32>
    %109 = vector.shape_cast %108 : vector<1x8x128xf32> to vector<8x128xf32>
    %c0_i32_68 = arith.constant 0 : i32
    %c0_69 = arith.constant 0 : index
    %110 = arith.index_cast %c0_i32_68 : i32 to index
    %c0_70 = arith.constant 0 : index
    %c0_71 = arith.constant 0 : index
    %111 = vector.load %arg6[%c0_69, %110, %c0_70, %c0_71] : memref<2x8x8x128xf32, #tpu.memory_space<vmem>>, vector<1x1x8x128xf32>
    %112 = vector.shape_cast %111 : vector<1x1x8x128xf32> to vector<8x128xf32>
    %113 = tpu.concatenate %112, %109 in 1 : vector<8x128xf32>, vector<8x128xf32> -> vector<8x256xf32>
    %cst_72 = arith.constant dense<0.000000e+00> : vector<8x128xf32>
    %114 = tpu.matmul %113, %103, %cst_72 {dimension_numbers = #tpu.dot_dimension_numbers<[1], [0], [0], [1], [0, 0, 1, 1], [], []>} : vector<8x256xf32>, vector<256x128xf32>, vector<8x128xf32> -> vector<8x128xf32>
    %115 = arith.addf %114, %107 : vector<8x128xf32>
    %116 = math.tanh %115 : vector<8x128xf32>
    %c1_73 = arith.constant 1 : index
    %117 = arith.index_cast %c0_i32_68 : i32 to index
    %c0_74 = arith.constant 0 : index
    %c0_75 = arith.constant 0 : index
    %118 = vector.load %arg6[%c1_73, %117, %c0_74, %c0_75] : memref<2x8x8x128xf32, #tpu.memory_space<vmem>>, vector<1x1x8x128xf32>
    %119 = vector.shape_cast %118 : vector<1x1x8x128xf32> to vector<8x128xf32>
    %120 = vector.shape_cast %116 : vector<8x128xf32> to vector<1x1x8x128xf32>
    tpu.vector_store %arg6[%c1_73, %117, %c0_74, %c0_75], %120 {strides = array<i32>} : memref<2x8x8x128xf32, #tpu.memory_space<vmem>>, vector<1x1x8x128xf32>,
    %c1_i32_76 = arith.constant 1 : i32
    %c0_77 = arith.constant 0 : index
    %121 = arith.index_cast %c1_i32_76 : i32 to index
    %c0_78 = arith.constant 0 : index
    %c0_79 = arith.constant 0 : index
    %122 = vector.load %arg6[%c0_77, %121, %c0_78, %c0_79] : memref<2x8x8x128xf32, #tpu.memory_space<vmem>>, vector<1x1x8x128xf32>
    %123 = vector.shape_cast %122 : vector<1x1x8x128xf32> to vector<8x128xf32>
    %124 = tpu.concatenate %123, %116 in 1 : vector<8x128xf32>, vector<8x128xf32> -> vector<8x256xf32>
    %cst_80 = arith.constant dense<0.000000e+00> : vector<8x128xf32>
    %125 = tpu.matmul %124, %103, %cst_80 {dimension_numbers = #tpu.dot_dimension_numbers<[1], [0], [0], [1], [0, 0, 1, 1], [], []>} : vector<8x256xf32>, vector<256x128xf32>, vector<8x128xf32> -> vector<8x128xf32>
    %126 = arith.addf %125, %107 : vector<8x128xf32>
    %127 = math.tanh %126 : vector<8x128xf32>
    %c1_81 = arith.constant 1 : index
    %128 = arith.index_cast %c1_i32_76 : i32 to index
    %c0_82 = arith.constant 0 : index
    %c0_83 = arith.constant 0 : index
    %129 = vector.load %arg6[%c1_81, %128, %c0_82, %c0_83] : memref<2x8x8x128xf32, #tpu.memory_space<vmem>>, vector<1x1x8x128xf32>
    %130 = vector.shape_cast %129 : vector<1x1x8x128xf32> to vector<8x128xf32>
    %131 = vector.shape_cast %127 : vector<8x128xf32> to vector<1x1x8x128xf32>
    tpu.vector_store %arg6[%c1_81, %128, %c0_82, %c0_83], %131 {strides = array<i32>} : memref<2x8x8x128xf32, #tpu.memory_space<vmem>>, vector<1x1x8x128xf32>,
    %c2_i32_84 = arith.constant 2 : i32
    %c0_85 = arith.constant 0 : index
    %132 = arith.index_cast %c2_i32_84 : i32 to index
    %c0_86 = arith.constant 0 : index
    %c0_87 = arith.constant 0 : index
    %133 = vector.load %arg6[%c0_85, %132, %c0_86, %c0_87] : memref<2x8x8x128xf32, #tpu.memory_space<vmem>>, vector<1x1x8x128xf32>
    %134 = vector.shape_cast %133 : vector<1x1x8x128xf32> to vector<8x128xf32>
    %135 = tpu.concatenate %134, %127 in 1 : vector<8x128xf32>, vector<8x128xf32> -> vector<8x256xf32>
    %cst_88 = arith.constant dense<0.000000e+00> : vector<8x128xf32>
    %136 = tpu.matmul %135, %103, %cst_88 {dimension_numbers = #tpu.dot_dimension_numbers<[1], [0], [0], [1], [0, 0, 1, 1], [], []>} : vector<8x256xf32>, vector<256x128xf32>, vector<8x128xf32> -> vector<8x128xf32>
    %137 = arith.addf %136, %107 : vector<8x128xf32>
    %138 = math.tanh %137 : vector<8x128xf32>
    %c1_89 = arith.constant 1 : index
    %139 = arith.index_cast %c2_i32_84 : i32 to index
    %c0_90 = arith.constant 0 : index
    %c0_91 = arith.constant 0 : index
    %140 = vector.load %arg6[%c1_89, %139, %c0_90, %c0_91] : memref<2x8x8x128xf32, #tpu.memory_space<vmem>>, vector<1x1x8x128xf32>
    %141 = vector.shape_cast %140 : vector<1x1x8x128xf32> to vector<8x128xf32>
    %142 = vector.shape_cast %138 : vector<8x128xf32> to vector<1x1x8x128xf32>
    tpu.vector_store %arg6[%c1_89, %139, %c0_90, %c0_91], %142 {strides = array<i32>} : memref<2x8x8x128xf32, #tpu.memory_space<vmem>>, vector<1x1x8x128xf32>,
    %c3_i32_92 = arith.constant 3 : i32
    %c0_93 = arith.constant 0 : index
    %143 = arith.index_cast %c3_i32_92 : i32 to index
    %c0_94 = arith.constant 0 : index
    %c0_95 = arith.constant 0 : index
    %144 = vector.load %arg6[%c0_93, %143, %c0_94, %c0_95] : memref<2x8x8x128xf32, #tpu.memory_space<vmem>>, vector<1x1x8x128xf32>
    %145 = vector.shape_cast %144 : vector<1x1x8x128xf32> to vector<8x128xf32>
    %146 = tpu.concatenate %145, %138 in 1 : vector<8x128xf32>, vector<8x128xf32> -> vector<8x256xf32>
    %cst_96 = arith.constant dense<0.000000e+00> : vector<8x128xf32>
    %147 = tpu.matmul %146, %103, %cst_96 {dimension_numbers = #tpu.dot_dimension_numbers<[1], [0], [0], [1], [0, 0, 1, 1], [], []>} : vector<8x256xf32>, vector<256x128xf32>, vector<8x128xf32> -> vector<8x128xf32>
    %148 = arith.addf %147, %107 : vector<8x128xf32>
    %149 = math.tanh %148 : vector<8x128xf32>
    %c1_97 = arith.constant 1 : index
    %150 = arith.index_cast %c3_i32_92 : i32 to index
    %c0_98 = arith.constant 0 : index
    %c0_99 = arith.constant 0 : index
    %151 = vector.load %arg6[%c1_97, %150, %c0_98, %c0_99] : memref<2x8x8x128xf32, #tpu.memory_space<vmem>>, vector<1x1x8x128xf32>
    %152 = vector.shape_cast %151 : vector<1x1x8x128xf32> to vector<8x128xf32>
    %153 = vector.shape_cast %149 : vector<8x128xf32> to vector<1x1x8x128xf32>
    tpu.vector_store %arg6[%c1_97, %150, %c0_98, %c0_99], %153 {strides = array<i32>} : memref<2x8x8x128xf32, #tpu.memory_space<vmem>>, vector<1x1x8x128xf32>,
    %c4_i32_100 = arith.constant 4 : i32
    %c0_101 = arith.constant 0 : index
    %154 = arith.index_cast %c4_i32_100 : i32 to index
    %c0_102 = arith.constant 0 : index
    %c0_103 = arith.constant 0 : index
    %155 = vector.load %arg6[%c0_101, %154, %c0_102, %c0_103] : memref<2x8x8x128xf32, #tpu.memory_space<vmem>>, vector<1x1x8x128xf32>
    %156 = vector.shape_cast %155 : vector<1x1x8x128xf32> to vector<8x128xf32>
    %157 = tpu.concatenate %156, %149 in 1 : vector<8x128xf32>, vector<8x128xf32> -> vector<8x256xf32>
    %cst_104 = arith.constant dense<0.000000e+00> : vector<8x128xf32>
    %158 = tpu.matmul %157, %103, %cst_104 {dimension_numbers = #tpu.dot_dimension_numbers<[1], [0], [0], [1], [0, 0, 1, 1], [], []>} : vector<8x256xf32>, vector<256x128xf32>, vector<8x128xf32> -> vector<8x128xf32>
    %159 = arith.addf %158, %107 : vector<8x128xf32>
    %160 = math.tanh %159 : vector<8x128xf32>
    %c1_105 = arith.constant 1 : index
    %161 = arith.index_cast %c4_i32_100 : i32 to index
    %c0_106 = arith.constant 0 : index
    %c0_107 = arith.constant 0 : index
    %162 = vector.load %arg6[%c1_105, %161, %c0_106, %c0_107] : memref<2x8x8x128xf32, #tpu.memory_space<vmem>>, vector<1x1x8x128xf32>
    %163 = vector.shape_cast %162 : vector<1x1x8x128xf32> to vector<8x128xf32>
    %164 = vector.shape_cast %160 : vector<8x128xf32> to vector<1x1x8x128xf32>
    tpu.vector_store %arg6[%c1_105, %161, %c0_106, %c0_107], %164 {strides = array<i32>} : memref<2x8x8x128xf32, #tpu.memory_space<vmem>>, vector<1x1x8x128xf32>,
    %c5_i32_108 = arith.constant 5 : i32
    %c0_109 = arith.constant 0 : index
    %165 = arith.index_cast %c5_i32_108 : i32 to index
    %c0_110 = arith.constant 0 : index
    %c0_111 = arith.constant 0 : index
    %166 = vector.load %arg6[%c0_109, %165, %c0_110, %c0_111] : memref<2x8x8x128xf32, #tpu.memory_space<vmem>>, vector<1x1x8x128xf32>
    %167 = vector.shape_cast %166 : vector<1x1x8x128xf32> to vector<8x128xf32>
    %168 = tpu.concatenate %167, %160 in 1 : vector<8x128xf32>, vector<8x128xf32> -> vector<8x256xf32>
    %cst_112 = arith.constant dense<0.000000e+00> : vector<8x128xf32>
    %169 = tpu.matmul %168, %103, %cst_112 {dimension_numbers = #tpu.dot_dimension_numbers<[1], [0], [0], [1], [0, 0, 1, 1], [], []>} : vector<8x256xf32>, vector<256x128xf32>, vector<8x128xf32> -> vector<8x128xf32>
    %170 = arith.addf %169, %107 : vector<8x128xf32>
    %171 = math.tanh %170 : vector<8x128xf32>
    %c1_113 = arith.constant 1 : index
    %172 = arith.index_cast %c5_i32_108 : i32 to index
    %c0_114 = arith.constant 0 : index
    %c0_115 = arith.constant 0 : index
    %173 = vector.load %arg6[%c1_113, %172, %c0_114, %c0_115] : memref<2x8x8x128xf32, #tpu.memory_space<vmem>>, vector<1x1x8x128xf32>
    %174 = vector.shape_cast %173 : vector<1x1x8x128xf32> to vector<8x128xf32>
    %175 = vector.shape_cast %171 : vector<8x128xf32> to vector<1x1x8x128xf32>
    tpu.vector_store %arg6[%c1_113, %172, %c0_114, %c0_115], %175 {strides = array<i32>} : memref<2x8x8x128xf32, #tpu.memory_space<vmem>>, vector<1x1x8x128xf32>,
    %c6_i32_116 = arith.constant 6 : i32
    %c0_117 = arith.constant 0 : index
    %176 = arith.index_cast %c6_i32_116 : i32 to index
    %c0_118 = arith.constant 0 : index
    %c0_119 = arith.constant 0 : index
    %177 = vector.load %arg6[%c0_117, %176, %c0_118, %c0_119] : memref<2x8x8x128xf32, #tpu.memory_space<vmem>>, vector<1x1x8x128xf32>
    %178 = vector.shape_cast %177 : vector<1x1x8x128xf32> to vector<8x128xf32>
    %179 = tpu.concatenate %178, %171 in 1 : vector<8x128xf32>, vector<8x128xf32> -> vector<8x256xf32>
    %cst_120 = arith.constant dense<0.000000e+00> : vector<8x128xf32>
    %180 = tpu.matmul %179, %103, %cst_120 {dimension_numbers = #tpu.dot_dimension_numbers<[1], [0], [0], [1], [0, 0, 1, 1], [], []>} : vector<8x256xf32>, vector<256x128xf32>, vector<8x128xf32> -> vector<8x128xf32>
    %181 = arith.addf %180, %107 : vector<8x128xf32>
    %182 = math.tanh %181 : vector<8x128xf32>
    %c1_121 = arith.constant 1 : index
    %183 = arith.index_cast %c6_i32_116 : i32 to index
    %c0_122 = arith.constant 0 : index
    %c0_123 = arith.constant 0 : index
    %184 = vector.load %arg6[%c1_121, %183, %c0_122, %c0_123] : memref<2x8x8x128xf32, #tpu.memory_space<vmem>>, vector<1x1x8x128xf32>
    %185 = vector.shape_cast %184 : vector<1x1x8x128xf32> to vector<8x128xf32>
    %186 = vector.shape_cast %182 : vector<8x128xf32> to vector<1x1x8x128xf32>
    tpu.vector_store %arg6[%c1_121, %183, %c0_122, %c0_123], %186 {strides = array<i32>} : memref<2x8x8x128xf32, #tpu.memory_space<vmem>>, vector<1x1x8x128xf32>,
    %c7_i32_124 = arith.constant 7 : i32
    %c0_125 = arith.constant 0 : index
    %187 = arith.index_cast %c7_i32_124 : i32 to index
    %c0_126 = arith.constant 0 : index
    %c0_127 = arith.constant 0 : index
    %188 = vector.load %arg6[%c0_125, %187, %c0_126, %c0_127] : memref<2x8x8x128xf32, #tpu.memory_space<vmem>>, vector<1x1x8x128xf32>
    %189 = vector.shape_cast %188 : vector<1x1x8x128xf32> to vector<8x128xf32>
    %190 = tpu.concatenate %189, %182 in 1 : vector<8x128xf32>, vector<8x128xf32> -> vector<8x256xf32>
    %cst_128 = arith.constant dense<0.000000e+00> : vector<8x128xf32>
    %191 = tpu.matmul %190, %103, %cst_128 {dimension_numbers = #tpu.dot_dimension_numbers<[1], [0], [0], [1], [0, 0, 1, 1], [], []>} : vector<8x256xf32>, vector<256x128xf32>, vector<8x128xf32> -> vector<8x128xf32>
    %192 = arith.addf %191, %107 : vector<8x128xf32>
    %193 = math.tanh %192 : vector<8x128xf32>
    %c1_129 = arith.constant 1 : index
    %194 = arith.index_cast %c7_i32_124 : i32 to index
    %c0_130 = arith.constant 0 : index
    %c0_131 = arith.constant 0 : index
    %195 = vector.load %arg6[%c1_129, %194, %c0_130, %c0_131] : memref<2x8x8x128xf32, #tpu.memory_space<vmem>>, vector<1x1x8x128xf32>
    %196 = vector.shape_cast %195 : vector<1x1x8x128xf32> to vector<8x128xf32>
    %197 = vector.shape_cast %193 : vector<8x128xf32> to vector<1x1x8x128xf32>
    tpu.vector_store %arg6[%c1_129, %194, %c0_130, %c0_131], %197 {strides = array<i32>} : memref<2x8x8x128xf32, #tpu.memory_space<vmem>>, vector<1x1x8x128xf32>,
    %c8_i32_132 = arith.constant 8 : i32
    %c1_133 = arith.constant 1 : index
    %c0_134 = arith.constant 0 : index
    %c0_135 = arith.constant 0 : index
    %198 = vector.load %arg8[%c1_133, %c0_134, %c0_135] : memref<2x8x128xf32, #tpu.memory_space<vmem>>, vector<1x8x128xf32>
    %199 = vector.shape_cast %198 : vector<1x8x128xf32> to vector<8x128xf32>
    %200 = vector.shape_cast %193 : vector<8x128xf32> to vector<1x8x128xf32>
    tpu.vector_store %arg8[%c1_133, %c0_134, %c0_135], %200 {strides = array<i32>} : memref<2x8x128xf32, #tpu.memory_space<vmem>>, vector<1x8x128xf32>,
    %c1_136 = arith.constant 1 : index
    %c0_137 = arith.constant 0 : index
    %c0_138 = arith.constant 0 : index
    %c0_139 = arith.constant 0 : index
    %201 = vector.load %arg6[%c1_136, %c0_137, %c0_138, %c0_139] : memref<2x8x8x128xf32, #tpu.memory_space<vmem>>, vector<1x8x8x128xf32>
    %202 = vector.shape_cast %201 : vector<1x8x8x128xf32> to vector<8x8x128xf32>
    %203 = vector.shape_cast %202 : vector<8x8x128xf32> to vector<64x128xf32>
    %c0_140 = arith.constant 0 : index
    %c0_141 = arith.constant 0 : index
    %204 = vector.load %arg4[%c0_140, %c0_141] : memref<128x128xf32, #tpu.memory_space<vmem>>, vector<128x128xf32>
    %cst_142 = arith.constant dense<0.000000e+00> : vector<64x128xf32>
    %205 = tpu.matmul %203, %204, %cst_142 {dimension_numbers = #tpu.dot_dimension_numbers<[1], [0], [0], [1], [0, 0, 1, 1], [], []>} : vector<64x128xf32>, vector<128x128xf32>, vector<64x128xf32> -> vector<64x128xf32>
    %c0_143 = arith.constant 0 : index
    %c0_144 = arith.constant 0 : index
    %206 = vector.load %arg5[%c0_143, %c0_144] : memref<1x128xf32, #tpu.memory_space<vmem>>, vector<1x128xf32>
    %207 = vector.broadcast %206 : vector<1x128xf32> to vector<64x128xf32>
    %208 = arith.addf %205, %207 : vector<64x128xf32>
    %209 = vector.shape_cast %208 : vector<64x128xf32> to vector<8x8x128xf32>
    %c0_145 = arith.constant 0 : index
    %c0_146 = arith.constant 0 : index
    %c0_147 = arith.constant 0 : index
    %210 = vector.load %arg7[%c0_145, %c0_146, %c0_147] : memref<8x8x128xf32, #tpu.memory_space<vmem>>, vector<8x8x128xf32>
    tpu.vector_store %arg7[%c0_145, %c0_146, %c0_147], %209 {strides = array<i32>} : memref<8x8x128xf32, #tpu.memory_space<vmem>>, vector<8x8x128xf32>,
    return
  }
  func.func @transform_0(%arg0: i32) -> (i32, i32, i32) {
    %c0_i32 = arith.constant 0 : i32
    %c0_i32_0 = arith.constant 0 : i32
    %c0_i32_1 = arith.constant 0 : i32
    return %arg0, %c0_i32, %c0_i32_0 : i32, i32, i32
  }
  func.func @transform_1(%arg0: i32) -> (i32, i32, i32) {
    %c0_i32 = arith.constant 0 : i32
    %c0_i32_0 = arith.constant 0 : i32
    %c0_i32_1 = arith.constant 0 : i32
    %c0_i32_2 = arith.constant 0 : i32
    return %c0_i32, %c0_i32_0, %c0_i32_1 : i32, i32, i32
  }
  func.func @transform_2(%arg0: i32) -> (i32, i32, i32) {
    %c0_i32 = arith.constant 0 : i32
    %c0_i32_0 = arith.constant 0 : i32
    %c0_i32_1 = arith.constant 0 : i32
    %c0_i32_2 = arith.constant 0 : i32
    return %c0_i32, %c0_i32_0, %c0_i32_1 : i32, i32, i32
  }
  func.func @transform_3(%arg0: i32) -> (i32, i32) {
    %c0_i32 = arith.constant 0 : i32
    %c0_i32_0 = arith.constant 0 : i32
    %c0_i32_1 = arith.constant 0 : i32
    return %c0_i32, %c0_i32_0 : i32, i32
  }
  func.func @transform_4(%arg0: i32) -> (i32, i32) {
    %c0_i32 = arith.constant 0 : i32
    %c0_i32_0 = arith.constant 0 : i32
    %c0_i32_1 = arith.constant 0 : i32
    return %c0_i32, %c0_i32_0 : i32, i32
  }
  func.func @transform_5(%arg0: i32) -> (i32, i32, i32, i32) {
    %c0_i32 = arith.constant 0 : i32
    %c0_i32_0 = arith.constant 0 : i32
    %c0_i32_1 = arith.constant 0 : i32
    %c0_i32_2 = arith.constant 0 : i32
    return %c0_i32, %arg0, %c0_i32_0, %c0_i32_1 : i32, i32, i32, i32
  }
  func.func @transform_6(%arg0: i32) -> (i32, i32, i32) {
    %c0_i32 = arith.constant 0 : i32
    %c0_i32_0 = arith.constant 0 : i32
    %c0_i32_1 = arith.constant 0 : i32
    return %arg0, %c0_i32, %c0_i32_0 : i32, i32, i32
  }
}

</mosaic_0001>

<llo_original>
// kernel: recurrent_network_forward.1
$region0: #{recurrent_network_forward.1}
  #allocation0 [shape = 'u32[]', space=smem, size = 0x4, offset = 0x4, fixed_abs, tag = 'smem constant byte address 0x4 - core index']
  #allocation1 [shape = 'u32[144,128]{1,0:T(1,128)}', space=vmem, size = 0x12000, scoped, tag = 'internal scratch']
  #allocation2 [shape = 'f32[2,8,128]{2,1,0:T(8,128)}', space=vmem, size = 0x2000, scoped, tag = 'scratch operand']
  %s0 = inlined_call_operand.vmem [shape: f32[8,8,128], index: 0, kind: input, shape index: {}]
  %s1 = inlined_call_operand.hbm [shape: f32[2,256,128], index: 1, kind: input, shape index: {}]
  %s2 = inlined_call_operand.vmem [shape: f32[2,1,128], index: 2, kind: input, shape index: {}]
  %s3 = inlined_call_operand.hbm [shape: f32[128,128], index: 3, kind: input, shape index: {}]
  %s4 = inlined_call_operand.vmem [shape: f32[1,128], index: 4, kind: input, shape index: {}]
  %s5 = inlined_call_operand.vmem [shape: f32[2,8,8,128], index: 5, kind: output, shape index: {0}]
  %s6 = inlined_call_operand.vmem [shape: f32[8,8,128], index: 6, kind: output, shape index: {1}]
  %7 = xla_tuple %s5, %s6
  %s8 = sld [smem:[#allocation0]]
  $region50: #{recurrent_network_forward.1} parent=0
    _
  %s10 = ssub.s32 1, %s8
  %s11 = scalar_select 0, %s10, %s8
  $region1: #{recurrent_network_forward.1} parent=0
    #allocation3 [shape = 'u8[262144]{0}', space=vmem, size = 0x40000, scoped, tag = 'input window, operand 1, single buffered']
    #allocation4 [shape = 's32[1]{0}', space=sflag, size = 0x4, scoped, tag = 'scoped memory for recurrent_network_forward.1']
    #allocation5 [shape = 'u8[65536]{0}', space=vmem, size = 0x10000, scoped, tag = 'input window, operand 3, single buffered']
    #allocation6 [shape = 's32[1]{0}', space=sflag, size = 0x4, scoped, tag = 'scoped memory for recurrent_network_forward.1']
    %12 = vsyncpa [#allocation4], 0
    %13 = vsyncpa [#allocation6], 0
    // Predicated region
    $region2: #{recurrent_network_forward.1} parent=1 // pred_check
      _
    $region3: #{recurrent_network_forward.1} parent=1 // pred_check_branch
      %15 = sbr.rel (0) target = $region5
    $region4: #{recurrent_network_forward.1} parent=1 // pred_region
      _
    $region5: #{recurrent_network_forward.1} parent=1 // pred_fallthru
      _
    // Predicated region
    $region6: #{recurrent_network_forward.1} parent=1 // pred_check
      _
    $region7: #{recurrent_network_forward.1} parent=1 // pred_check_branch
      %17 = sbr.rel (0) target = $region9
    $region8: #{recurrent_network_forward.1} parent=1 // pred_region
      %s19 = ssub.s32 8192, 8192
      %20 = vsyncadd [#allocation4], %s19
      %s21 = sshll.u32 [#allocation3], 4
      %s22 = int_to_ptr.vmem [resolvable:$true] %s21
      %27 = dma.hbm_to_vmem [thread:$0]  %s1, 8192, %s22, [#allocation4], 128, 128, 8
    $region9: #{recurrent_network_forward.1} parent=1 // pred_fallthru
      _
    // Predicated region
    $region10: #{recurrent_network_forward.1} parent=1 // pred_check
      _
    $region11: #{recurrent_network_forward.1} parent=1 // pred_check_branch
      %29 = sbr.rel (0) target = $region13
    $region12: #{recurrent_network_forward.1} parent=1 // pred_region
      _
    $region13: #{recurrent_network_forward.1} parent=1 // pred_fallthru
      _
    // Predicated region
    $region14: #{recurrent_network_forward.1} parent=1 // pred_check
      _
    $region15: #{recurrent_network_forward.1} parent=1 // pred_check_branch
      %31 = sbr.rel (0) target = $region17
    $region16: #{recurrent_network_forward.1} parent=1 // pred_region
      %s33 = ssub.s32 2048, 2048
      %34 = vsyncadd [#allocation6], %s33
      %s35 = sshll.u32 [#allocation5], 4
      %s36 = int_to_ptr.vmem [resolvable:$true] %s35
      %41 = dma.hbm_to_vmem [thread:$0]  %s3, 2048, %s36, [#allocation6], 128, 128, 8
    $region17: #{recurrent_network_forward.1} parent=1 // pred_fallthru
      _
    // Predicated region
    $region18: #{recurrent_network_forward.1} parent=1 // pred_check
      _
    $region19: #{recurrent_network_forward.1} parent=1 // pred_check_branch
      %43 = sbr.rel (0) target = $region21
    $region20: #{recurrent_network_forward.1} parent=1 // pred_region
      _
    $region21: #{recurrent_network_forward.1} parent=1 // pred_fallthru
      _
    // Predicated region
    $region22: #{recurrent_network_forward.1} parent=1 // pred_check
      _
    $region23: #{recurrent_network_forward.1} parent=1 // pred_check_branch
      %45 = sbr.rel (0) target = $region25
    $region24: #{recurrent_network_forward.1} parent=1 // pred_region
      %46 = dma.done [#allocation4], 8192
    $region25: #{recurrent_network_forward.1} parent=1 // pred_fallthru
      _
    // Predicated region
    $region26: #{recurrent_network_forward.1} parent=1 // pred_check
      _
    $region27: #{recurrent_network_forward.1} parent=1 // pred_check_branch
      %48 = sbr.rel (0) target = $region29
    $region28: #{recurrent_network_forward.1} parent=1 // pred_region
      %49 = dma.done [#allocation6], 2048
    $region29: #{recurrent_network_forward.1} parent=1 // pred_fallthru
      _
    %p50 = scmp.eq.s32.totalorder 0, 0
    // Predicated region
    $region30: #{recurrent_network_forward.1} parent=1 // pred_check
      %p51 = pneg %p50
    $region31: #{recurrent_network_forward.1} parent=1 // pred_check_branch
      %53 = sbr.rel (%p51) target = $region33
    $region32: #{recurrent_network_forward.1} parent=1 // pred_region
      %54 = vst [vmem:[#allocation2] sm:$0xff] 0.0
      %55 = vst [vmem:[#allocation2 + $0x8] sm:$0xff] 0.0
    $region33: #{recurrent_network_forward.1} parent=1 // pred_fallthru
      _
    %v56 = vld [vmem:[#allocation3] sm:$0xff]
    %v57 = vld [vmem:[#allocation3 + $0x8] sm:$0xff]
    %v58 = vld [vmem:[#allocation3 + $0x10] sm:$0xff]
    %v59 = vld [vmem:[#allocation3 + $0x18] sm:$0xff]
    %v60 = vld [vmem:[#allocation3 + $0x20] sm:$0xff]
    %v61 = vld [vmem:[#allocation3 + $0x28] sm:$0xff]
    %v62 = vld [vmem:[#allocation3 + $0x30] sm:$0xff]
    %v63 = vld [vmem:[#allocation3 + $0x38] sm:$0xff]
    %v64 = vld [vmem:[#allocation3 + $0x40] sm:$0xff]
    %v65 = vld [vmem:[#allocation3 + $0x48] sm:$0xff]
    %v66 = vld [vmem:[#allocation3 + $0x50] sm:$0xff]
    %v67 = vld [vmem:[#allocation3 + $0x58] sm:$0xff]
    %v68 = vld [vmem:[#allocation3 + $0x60] sm:$0xff]
    %v69 = vld [vmem:[#allocation3 + $0x68] sm:$0xff]
    %v70 = vld [vmem:[#allocation3 + $0x70] sm:$0xff]
    %v71 = vld [vmem:[#allocation3 + $0x78] sm:$0xff]
    %v72 = vld [vmem:[#allocation3 + $0x80] sm:$0xff]
    %v73 = vld [vmem:[#allocation3 + $0x88] sm:$0xff]
    %v74 = vld [vmem:[#allocation3 + $0x90] sm:$0xff]
    %v75 = vld [vmem:[#allocation3 + $0x98] sm:$0xff]
    %v76 = vld [vmem:[#allocation3 + $0xa0] sm:$0xff]
    %v77 = vld [vmem:[#allocation3 + $0xa8] sm:$0xff]
    %v78 = vld [vmem:[#allocation3 + $0xb0] sm:$0xff]
    %v79 = vld [vmem:[#allocation3 + $0xb8] sm:$0xff]
    %v80 = vld [vmem:[#allocation3 + $0xc0] sm:$0xff]
    %v81 = vld [vmem:[#allocation3 + $0xc8] sm:$0xff]
    %v82 = vld [vmem:[#allocation3 + $0xd0] sm:$0xff]
    %v83 = vld [vmem:[#allocation3 + $0xd8] sm:$0xff]
    %v84 = vld [vmem:[#allocation3 + $0xe0] sm:$0xff]
    %v85 = vld [vmem:[#allocation3 + $0xe8] sm:$0xff]
    %v86 = vld [vmem:[#allocation3 + $0xf0] sm:$0xff]
    %v87 = vld [vmem:[#allocation3 + $0xf8] sm:$0xff]
    %v88 = vld [vmem:[%s2] sm:$0x1]
    %v90 = vlaneseq
    %v91 = vshrl.u32 %v90, 7
    %v92 = vsub.s32 0, %v91
    %v93 = vrot.slane %v88, %v92
    %v95 = vld [vmem:[#allocation2] sm:$0xff]
    %v96 = vld [vmem:[%s0] sm:$0xff]
    %97 = vmatprep.subr.mxu0 0.0
    %98 = vmatpush1.msra.mxu0 %v71
    %99 = vmatprep.subr.mxu0 0.0
    %100 = vmatpush1.msra.mxu0 %v70
    %101 = vmatprep.subr.mxu0 0.0
    %102 = vmatpush1.msra.mxu0 %v69
    %103 = vmatprep.subr.mxu0 0.0
    %104 = vmatpush1.msra.mxu0 %v68
    %105 = vmatprep.subr.mxu0 0.0
    %106 = vmatpush1.msra.mxu0 %v67
    %107 = vmatprep.subr.mxu0 0.0
    %108 = vmatpush1.msra.mxu0 %v66
    %109 = vmatprep.subr.mxu0 0.0
    %110 = vmatpush1.msra.mxu0 %v65
    %111 = vmatprep.subr.mxu0 0.0
    %112 = vmatpush1.msra.mxu0 %v64
    %113 = vmatprep.subr.mxu0 0.0
    %114 = vmatpush1.msra.mxu0 %v63
    %115 = vmatprep.subr.mxu0 0.0
    %116 = vmatpush1.msra.mxu0 %v62
    %117 = vmatprep.subr.mxu0 0.0
    %118 = vmatpush1.msra.mxu0 %v61
    %119 = vmatprep.subr.mxu0 0.0
    %120 = vmatpush1.msra.mxu0 %v60
    %121 = vmatprep.subr.mxu0 0.0
    %122 = vmatpush1.msra.mxu0 %v59
    %123 = vmatprep.subr.mxu0 0.0
    %124 = vmatpush1.msra.mxu0 %v58
    %125 = vmatprep.subr.mxu0 0.0
    %126 = vmatpush1.msra.mxu0 %v57
    %127 = vmatprep.subr.mxu0 0.0
    %128 = vmatpush1.msra.mxu0 %v56
    %129 = vmatprep.subr.mxu0 0.0
    %130 = vmatpush2.msra.mxu0 %v87
    %131 = vmatprep.subr.mxu0 0.0
    %132 = vmatpush2.msra.mxu0 %v86
    %133 = vmatprep.subr.mxu0 0.0
    %134 = vmatpush2.msra.mxu0 %v85
    %135 = vmatprep.subr.mxu0 0.0
    %136 = vmatpush2.msra.mxu0 %v84
    %137 = vmatprep.subr.mxu0 0.0
    %138 = vmatpush2.msra.mxu0 %v83
    %139 = vmatprep.subr.mxu0 0.0
    %140 = vmatpush2.msra.mxu0 %v82
    %141 = vmatprep.subr.mxu0 0.0
    %142 = vmatpush2.msra.mxu0 %v81
    %143 = vmatprep.subr.mxu0 0.0
    %144 = vmatpush2.msra.mxu0 %v80
    %145 = vmatprep.subr.mxu0 0.0
    %146 = vmatpush2.msra.mxu0 %v79
    %147 = vmatprep.subr.mxu0 0.0
    %148 = vmatpush2.msra.mxu0 %v78
    %149 = vmatprep.subr.mxu0 0.0
    %150 = vmatpush2.msra.mxu0 %v77
    %151 = vmatprep.subr.mxu0 0.0
    %152 = vmatpush2.msra.mxu0 %v76
    %153 = vmatprep.subr.mxu0 0.0
    %154 = vmatpush2.msra.mxu0 %v75
    %155 = vmatprep.subr.mxu0 0.0
    %156 = vmatpush2.msra.mxu0 %v74
    %157 = vmatprep.subr.mxu0 0.0
    %158 = vmatpush2.msra.mxu0 %v73
    %159 = vmatprep.subr.mxu0 0.0
    %160 = vmatpush2.msra.mxu0 %v72
    %161 = vmatprep.mubr.f32.mxu0 %v95
    %162 = vmatmul.mubr.f32.gmra.mxu0 %v96
    %v163 = vpop.f32.mrf.mxu0
    %v164 = vadd.f32 %v93, %v163
    %v165 = vpop.f32.mrf.mxu0
    %166 = vdwg.mxu0
    %v167 = vtanh.pop %v164
    %168 = vst [vmem:[%s5] sm:$0xff] %v167
    %s169 = scalar_lea.vmem %s0, 8
    %v170 = vld [vmem:[%s169] sm:$0xff]
    %171 = vmatprep.subr.mxu0 0.0
    %172 = vmatpush1.msra.mxu0 %v71
    %173 = vmatprep.subr.mxu0 0.0
    %174 = vmatpush1.msra.mxu0 %v70
    %175 = vmatprep.subr.mxu0 0.0
    %176 = vmatpush1.msra.mxu0 %v69
    %177 = vmatprep.subr.mxu0 0.0
    %178 = vmatpush1.msra.mxu0 %v68
    %179 = vmatprep.subr.mxu0 0.0
    %180 = vmatpush1.msra.mxu0 %v67
    %181 = vmatprep.subr.mxu0 0.0
    %182 = vmatpush1.msra.mxu0 %v66
    %183 = vmatprep.subr.mxu0 0.0
    %184 = vmatpush1.msra.mxu0 %v65
    %185 = vmatprep.subr.mxu0 0.0
    %186 = vmatpush1.msra.mxu0 %v64
    %187 = vmatprep.subr.mxu0 0.0
    %188 = vmatpush1.msra.mxu0 %v63
    %189 = vmatprep.subr.mxu0 0.0
    %190 = vmatpush1.msra.mxu0 %v62
    %191 = vmatprep.subr.mxu0 0.0
    %192 = vmatpush1.msra.mxu0 %v61
    %193 = vmatprep.subr.mxu0 0.0
    %194 = vmatpush1.msra.mxu0 %v60
    %195 = vmatprep.subr.mxu0 0.0
    %196 = vmatpush1.msra.mxu0 %v59
    %197 = vmatprep.subr.mxu0 0.0
    %198 = vmatpush1.msra.mxu0 %v58
    %199 = vmatprep.subr.mxu0 0.0
    %200 = vmatpush1.msra.mxu0 %v57
    %201 = vmatprep.subr.mxu0 0.0
    %202 = vmatpush1.msra.mxu0 %v56
    %203 = vmatprep.subr.mxu0 0.0
    %204 = vmatpush2.msra.mxu0 %v87
    %205 = vmatprep.subr.mxu0 0.0
    %206 = vmatpush2.msra.mxu0 %v86
    %207 = vmatprep.subr.mxu0 0.0
    %208 = vmatpush2.msra.mxu0 %v85
    %209 = vmatprep.subr.mxu0 0.0
    %210 = vmatpush2.msra.mxu0 %v84
    %211 = vmatprep.subr.mxu0 0.0
    %212 = vmatpush2.msra.mxu0 %v83
    %213 = vmatprep.subr.mxu0 0.0
    %214 = vmatpush2.msra.mxu0 %v82
    %215 = vmatprep.subr.mxu0 0.0
    %216 = vmatpush2.msra.mxu0 %v81
    %217 = vmatprep.subr.mxu0 0.0
    %218 = vmatpush2.msra.mxu0 %v80
    %219 = vmatprep.subr.mxu0 0.0
    %220 = vmatpush2.msra.mxu0 %v79
    %221 = vmatprep.subr.mxu0 0.0
    %222 = vmatpush2.msra.mxu0 %v78
    %223 = vmatprep.subr.mxu0 0.0
    %224 = vmatpush2.msra.mxu0 %v77
    %225 = vmatprep.subr.mxu0 0.0
    %226 = vmatpush2.msra.mxu0 %v76
    %227 = vmatprep.subr.mxu0 0.0
    %228 = vmatpush2.msra.mxu0 %v75
    %229 = vmatprep.subr.mxu0 0.0
    %230 = vmatpush2.msra.mxu0 %v74
    %231 = vmatprep.subr.mxu0 0.0
    %232 = vmatpush2.msra.mxu0 %v73
    %233 = vmatprep.subr.mxu0 0.0
    %234 = vmatpush2.msra.mxu0 %v72
    %235 = vmatprep.mubr.f32.mxu0 %v167
    %236 = vmatmul.mubr.f32.gmra.mxu0 %v170
    %v237 = vpop.f32.mrf.mxu0
    %v238 = vadd.f32 %v93, %v237
    %v239 = vpop.f32.mrf.mxu0
    %240 = vdwg.mxu0
    %v241 = vtanh.pop %v238
    %s242 = scalar_lea.vmem %s5, 8
    %243 = vst [vmem:[%s242] sm:$0xff] %v241
    %s244 = scalar_lea.vmem %s0, 16
    %v245 = vld [vmem:[%s244] sm:$0xff]
    %246 = vmatprep.subr.mxu0 0.0
    %247 = vmatpush1.msra.mxu0 %v71
    %248 = vmatprep.subr.mxu0 0.0
    %249 = vmatpush1.msra.mxu0 %v70
    %250 = vmatprep.subr.mxu0 0.0
    %251 = vmatpush1.msra.mxu0 %v69
    %252 = vmatprep.subr.mxu0 0.0
    %253 = vmatpush1.msra.mxu0 %v68
    %254 = vmatprep.subr.mxu0 0.0
    %255 = vmatpush1.msra.mxu0 %v67
    %256 = vmatprep.subr.mxu0 0.0
    %257 = vmatpush1.msra.mxu0 %v66
    %258 = vmatprep.subr.mxu0 0.0
    %259 = vmatpush1.msra.mxu0 %v65
    %260 = vmatprep.subr.mxu0 0.0
    %261 = vmatpush1.msra.mxu0 %v64
    %262 = vmatprep.subr.mxu0 0.0
    %263 = vmatpush1.msra.mxu0 %v63
    %264 = vmatprep.subr.mxu0 0.0
    %265 = vmatpush1.msra.mxu0 %v62
    %266 = vmatprep.subr.mxu0 0.0
    %267 = vmatpush1.msra.mxu0 %v61
    %268 = vmatprep.subr.mxu0 0.0
    %269 = vmatpush1.msra.mxu0 %v60
    %270 = vmatprep.subr.mxu0 0.0
    %271 = vmatpush1.msra.mxu0 %v59
    %272 = vmatprep.subr.mxu0 0.0
    %273 = vmatpush1.msra.mxu0 %v58
    %274 = vmatprep.subr.mxu0 0.0
    %275 = vmatpush1.msra.mxu0 %v57
    %276 = vmatprep.subr.mxu0 0.0
    %277 = vmatpush1.msra.mxu0 %v56
    %278 = vmatprep.subr.mxu0 0.0
    %279 = vmatpush2.msra.mxu0 %v87
    %280 = vmatprep.subr.mxu0 0.0
    %281 = vmatpush2.msra.mxu0 %v86
    %282 = vmatprep.subr.mxu0 0.0
    %283 = vmatpush2.msra.mxu0 %v85
    %284 = vmatprep.subr.mxu0 0.0
    %285 = vmatpush2.msra.mxu0 %v84
    %286 = vmatprep.subr.mxu0 0.0
    %287 = vmatpush2.msra.mxu0 %v83
    %288 = vmatprep.subr.mxu0 0.0
    %289 = vmatpush2.msra.mxu0 %v82
    %290 = vmatprep.subr.mxu0 0.0
    %291 = vmatpush2.msra.mxu0 %v81
    %292 = vmatprep.subr.mxu0 0.0
    %293 = vmatpush2.msra.mxu0 %v80
    %294 = vmatprep.subr.mxu0 0.0
    %295 = vmatpush2.msra.mxu0 %v79
    %296 = vmatprep.subr.mxu0 0.0
    %297 = vmatpush2.msra.mxu0 %v78
    %298 = vmatprep.subr.mxu0 0.0
    %299 = vmatpush2.msra.mxu0 %v77
    %300 = vmatprep.subr.mxu0 0.0
    %301 = vmatpush2.msra.mxu0 %v76
    %302 = vmatprep.subr.mxu0 0.0
    %303 = vmatpush2.msra.mxu0 %v75
    %304 = vmatprep.subr.mxu0 0.0
    %305 = vmatpush2.msra.mxu0 %v74
    %306 = vmatprep.subr.mxu0 0.0
    %307 = vmatpush2.msra.mxu0 %v73
    %308 = vmatprep.subr.mxu0 0.0
    %309 = vmatpush2.msra.mxu0 %v72
    %310 = vmatprep.mubr.f32.mxu0 %v241
    %311 = vmatmul.mubr.f32.gmra.mxu0 %v245
    %v312 = vpop.f32.mrf.mxu0
    %v313 = vadd.f32 %v93, %v312
    %v314 = vpop.f32.mrf.mxu0
    %315 = vdwg.mxu0
    %v316 = vtanh.pop %v313
    %s317 = scalar_lea.vmem %s5, 16
    %318 = vst [vmem:[%s317] sm:$0xff] %v316
    %s319 = scalar_lea.vmem %s0, 24
    %v320 = vld [vmem:[%s319] sm:$0xff]
    %321 = vmatprep.subr.mxu0 0.0
    %322 = vmatpush1.msra.mxu0 %v71
    %323 = vmatprep.subr.mxu0 0.0
    %324 = vmatpush1.msra.mxu0 %v70
    %325 = vmatprep.subr.mxu0 0.0
    %326 = vmatpush1.msra.mxu0 %v69
    %327 = vmatprep.subr.mxu0 0.0
    %328 = vmatpush1.msra.mxu0 %v68
    %329 = vmatprep.subr.mxu0 0.0
    %330 = vmatpush1.msra.mxu0 %v67
    %331 = vmatprep.subr.mxu0 0.0
    %332 = vmatpush1.msra.mxu0 %v66
    %333 = vmatprep.subr.mxu0 0.0
    %334 = vmatpush1.msra.mxu0 %v65
    %335 = vmatprep.subr.mxu0 0.0
    %336 = vmatpush1.msra.mxu0 %v64
    %337 = vmatprep.subr.mxu0 0.0
    %338 = vmatpush1.msra.mxu0 %v63
    %339 = vmatprep.subr.mxu0 0.0
    %340 = vmatpush1.msra.mxu0 %v62
    %341 = vmatprep.subr.mxu0 0.0
    %342 = vmatpush1.msra.mxu0 %v61
    %343 = vmatprep.subr.mxu0 0.0
    %344 = vmatpush1.msra.mxu0 %v60
    %345 = vmatprep.subr.mxu0 0.0
    %346 = vmatpush1.msra.mxu0 %v59
    %347 = vmatprep.subr.mxu0 0.0
    %348 = vmatpush1.msra.mxu0 %v58
    %349 = vmatprep.subr.mxu0 0.0
    %350 = vmatpush1.msra.mxu0 %v57
    %351 = vmatprep.subr.mxu0 0.0
    %352 = vmatpush1.msra.mxu0 %v56
    %353 = vmatprep.subr.mxu0 0.0
    %354 = vmatpush2.msra.mxu0 %v87
    %355 = vmatprep.subr.mxu0 0.0
    %356 = vmatpush2.msra.mxu0 %v86
    %357 = vmatprep.subr.mxu0 0.0
    %358 = vmatpush2.msra.mxu0 %v85
    %359 = vmatprep.subr.mxu0 0.0
    %360 = vmatpush2.msra.mxu0 %v84
    %361 = vmatprep.subr.mxu0 0.0
    %362 = vmatpush2.msra.mxu0 %v83
    %363 = vmatprep.subr.mxu0 0.0
    %364 = vmatpush2.msra.mxu0 %v82
    %365 = vmatprep.subr.mxu0 0.0
    %366 = vmatpush2.msra.mxu0 %v81
    %367 = vmatprep.subr.mxu0 0.0
    %368 = vmatpush2.msra.mxu0 %v80
    %369 = vmatprep.subr.mxu0 0.0
    %370 = vmatpush2.msra.mxu0 %v79
    %371 = vmatprep.subr.mxu0 0.0
    %372 = vmatpush2.msra.mxu0 %v78
    %373 = vmatprep.subr.mxu0 0.0
    %374 = vmatpush2.msra.mxu0 %v77
    %375 = vmatprep.subr.mxu0 0.0
    %376 = vmatpush2.msra.mxu0 %v76
    %377 = vmatprep.subr.mxu0 0.0
    %378 = vmatpush2.msra.mxu0 %v75
    %379 = vmatprep.subr.mxu0 0.0
    %380 = vmatpush2.msra.mxu0 %v74
    %381 = vmatprep.subr.mxu0 0.0
    %382 = vmatpush2.msra.mxu0 %v73
    %383 = vmatprep.subr.mxu0 0.0
    %384 = vmatpush2.msra.mxu0 %v72
    %385 = vmatprep.mubr.f32.mxu0 %v316
    %386 = vmatmul.mubr.f32.gmra.mxu0 %v320
    %v387 = vpop.f32.mrf.mxu0
    %v388 = vadd.f32 %v93, %v387
    %v389 = vpop.f32.mrf.mxu0
    %390 = vdwg.mxu0
    %v391 = vtanh.pop %v388
    %s392 = scalar_lea.vmem %s5, 24
    %393 = vst [vmem:[%s392] sm:$0xff] %v391
    %s394 = scalar_lea.vmem %s0, 32
    %v395 = vld [vmem:[%s394] sm:$0xff]
    %396 = vmatprep.subr.mxu0 0.0
    %397 = vmatpush1.msra.mxu0 %v71
    %398 = vmatprep.subr.mxu0 0.0
    %399 = vmatpush1.msra.mxu0 %v70
    %400 = vmatprep.subr.mxu0 0.0
    %401 = vmatpush1.msra.mxu0 %v69
    %402 = vmatprep.subr.mxu0 0.0
    %403 = vmatpush1.msra.mxu0 %v68
    %404 = vmatprep.subr.mxu0 0.0
    %405 = vmatpush1.msra.mxu0 %v67
    %406 = vmatprep.subr.mxu0 0.0
    %407 = vmatpush1.msra.mxu0 %v66
    %408 = vmatprep.subr.mxu0 0.0
    %409 = vmatpush1.msra.mxu0 %v65
    %410 = vmatprep.subr.mxu0 0.0
    %411 = vmatpush1.msra.mxu0 %v64
    %412 = vmatprep.subr.mxu0 0.0
    %413 = vmatpush1.msra.mxu0 %v63
    %414 = vmatprep.subr.mxu0 0.0
    %415 = vmatpush1.msra.mxu0 %v62
    %416 = vmatprep.subr.mxu0 0.0
    %417 = vmatpush1.msra.mxu0 %v61
    %418 = vmatprep.subr.mxu0 0.0
    %419 = vmatpush1.msra.mxu0 %v60
    %420 = vmatprep.subr.mxu0 0.0
    %421 = vmatpush1.msra.mxu0 %v59
    %422 = vmatprep.subr.mxu0 0.0
    %423 = vmatpush1.msra.mxu0 %v58
    %424 = vmatprep.subr.mxu0 0.0
    %425 = vmatpush1.msra.mxu0 %v57
    %426 = vmatprep.subr.mxu0 0.0
    %427 = vmatpush1.msra.mxu0 %v56
    %428 = vmatprep.subr.mxu0 0.0
    %429 = vmatpush2.msra.mxu0 %v87
    %430 = vmatprep.subr.mxu0 0.0
    %431 = vmatpush2.msra.mxu0 %v86
    %432 = vmatprep.subr.mxu0 0.0
    %433 = vmatpush2.msra.mxu0 %v85
    %434 = vmatprep.subr.mxu0 0.0
    %435 = vmatpush2.msra.mxu0 %v84
    %436 = vmatprep.subr.mxu0 0.0
    %437 = vmatpush2.msra.mxu0 %v83
    %438 = vmatprep.subr.mxu0 0.0
    %439 = vmatpush2.msra.mxu0 %v82
    %440 = vmatprep.subr.mxu0 0.0
    %441 = vmatpush2.msra.mxu0 %v81
    %442 = vmatprep.subr.mxu0 0.0
    %443 = vmatpush2.msra.mxu0 %v80
    %444 = vmatprep.subr.mxu0 0.0
    %445 = vmatpush2.msra.mxu0 %v79
    %446 = vmatprep.subr.mxu0 0.0
    %447 = vmatpush2.msra.mxu0 %v78
    %448 = vmatprep.subr.mxu0 0.0
    %449 = vmatpush2.msra.mxu0 %v77
    %450 = vmatprep.subr.mxu0 0.0
    %451 = vmatpush2.msra.mxu0 %v76
    %452 = vmatprep.subr.mxu0 0.0
    %453 = vmatpush2.msra.mxu0 %v75
    %454 = vmatprep.subr.mxu0 0.0
    %455 = vmatpush2.msra.mxu0 %v74
    %456 = vmatprep.subr.mxu0 0.0
    %457 = vmatpush2.msra.mxu0 %v73
    %458 = vmatprep.subr.mxu0 0.0
    %459 = vmatpush2.msra.mxu0 %v72
    %460 = vmatprep.mubr.f32.mxu0 %v391
    %461 = vmatmul.mubr.f32.gmra.mxu0 %v395
    %v462 = vpop.f32.mrf.mxu0
    %v463 = vadd.f32 %v93, %v462
    %v464 = vpop.f32.mrf.mxu0
    %465 = vdwg.mxu0
    %v466 = vtanh.pop %v463
    %s467 = scalar_lea.vmem %s5, 32
    %468 = vst [vmem:[%s467] sm:$0xff] %v466
    %s469 = scalar_lea.vmem %s0, 40
    %v470 = vld [vmem:[%s469] sm:$0xff]
    %471 = vmatprep.subr.mxu0 0.0
    %472 = vmatpush1.msra.mxu0 %v71
    %473 = vmatprep.subr.mxu0 0.0
    %474 = vmatpush1.msra.mxu0 %v70
    %475 = vmatprep.subr.mxu0 0.0
    %476 = vmatpush1.msra.mxu0 %v69
    %477 = vmatprep.subr.mxu0 0.0
    %478 = vmatpush1.msra.mxu0 %v68
    %479 = vmatprep.subr.mxu0 0.0
    %480 = vmatpush1.msra.mxu0 %v67
    %481 = vmatprep.subr.mxu0 0.0
    %482 = vmatpush1.msra.mxu0 %v66
    %483 = vmatprep.subr.mxu0 0.0
    %484 = vmatpush1.msra.mxu0 %v65
    %485 = vmatprep.subr.mxu0 0.0
    %486 = vmatpush1.msra.mxu0 %v64
    %487 = vmatprep.subr.mxu0 0.0
    %488 = vmatpush1.msra.mxu0 %v63
    %489 = vmatprep.subr.mxu0 0.0
    %490 = vmatpush1.msra.mxu0 %v62
    %491 = vmatprep.subr.mxu0 0.0
    %492 = vmatpush1.msra.mxu0 %v61
    %493 = vmatprep.subr.mxu0 0.0
    %494 = vmatpush1.msra.mxu0 %v60
    %495 = vmatprep.subr.mxu0 0.0
    %496 = vmatpush1.msra.mxu0 %v59
    %497 = vmatprep.subr.mxu0 0.0
    %498 = vmatpush1.msra.mxu0 %v58
    %499 = vmatprep.subr.mxu0 0.0
    %500 = vmatpush1.msra.mxu0 %v57
    %501 = vmatprep.subr.mxu0 0.0
    %502 = vmatpush1.msra.mxu0 %v56
    %503 = vmatprep.subr.mxu0 0.0
    %504 = vmatpush2.msra.mxu0 %v87
    %505 = vmatprep.subr.mxu0 0.0
    %506 = vmatpush2.msra.mxu0 %v86
    %507 = vmatprep.subr.mxu0 0.0
    %508 = vmatpush2.msra.mxu0 %v85
    %509 = vmatprep.subr.mxu0 0.0
    %510 = vmatpush2.msra.mxu0 %v84
    %511 = vmatprep.subr.mxu0 0.0
    %512 = vmatpush2.msra.mxu0 %v83
    %513 = vmatprep.subr.mxu0 0.0
    %514 = vmatpush2.msra.mxu0 %v82
    %515 = vmatprep.subr.mxu0 0.0
    %516 = vmatpush2.msra.mxu0 %v81
    %517 = vmatprep.subr.mxu0 0.0
    %518 = vmatpush2.msra.mxu0 %v80
    %519 = vmatprep.subr.mxu0 0.0
    %520 = vmatpush2.msra.mxu0 %v79
    %521 = vmatprep.subr.mxu0 0.0
    %522 = vmatpush2.msra.mxu0 %v78
    %523 = vmatprep.subr.mxu0 0.0
    %524 = vmatpush2.msra.mxu0 %v77
    %525 = vmatprep.subr.mxu0 0.0
    %526 = vmatpush2.msra.mxu0 %v76
    %527 = vmatprep.subr.mxu0 0.0
    %528 = vmatpush2.msra.mxu0 %v75
    %529 = vmatprep.subr.mxu0 0.0
    %530 = vmatpush2.msra.mxu0 %v74
    %531 = vmatprep.subr.mxu0 0.0
    %532 = vmatpush2.msra.mxu0 %v73
    %533 = vmatprep.subr.mxu0 0.0
    %534 = vmatpush2.msra.mxu0 %v72
    %535 = vmatprep.mubr.f32.mxu0 %v466
    %536 = vmatmul.mubr.f32.gmra.mxu0 %v470
    %v537 = vpop.f32.mrf.mxu0
    %v538 = vadd.f32 %v93, %v537
    %v539 = vpop.f32.mrf.mxu0
    %540 = vdwg.mxu0
    %v541 = vtanh.pop %v538
    %s542 = scalar_lea.vmem %s5, 40
    %543 = vst [vmem:[%s542] sm:$0xff] %v541
    %s544 = scalar_lea.vmem %s0, 48
    %v545 = vld [vmem:[%s544] sm:$0xff]
    %546 = vmatprep.subr.mxu0 0.0
    %547 = vmatpush1.msra.mxu0 %v71
    %548 = vmatprep.subr.mxu0 0.0
    %549 = vmatpush1.msra.mxu0 %v70
    %550 = vmatprep.subr.mxu0 0.0
    %551 = vmatpush1.msra.mxu0 %v69
    %552 = vmatprep.subr.mxu0 0.0
    %553 = vmatpush1.msra.mxu0 %v68
    %554 = vmatprep.subr.mxu0 0.0
    %555 = vmatpush1.msra.mxu0 %v67
    %556 = vmatprep.subr.mxu0 0.0
    %557 = vmatpush1.msra.mxu0 %v66
    %558 = vmatprep.subr.mxu0 0.0
    %559 = vmatpush1.msra.mxu0 %v65
    %560 = vmatprep.subr.mxu0 0.0
    %561 = vmatpush1.msra.mxu0 %v64
    %562 = vmatprep.subr.mxu0 0.0
    %563 = vmatpush1.msra.mxu0 %v63
    %564 = vmatprep.subr.mxu0 0.0
    %565 = vmatpush1.msra.mxu0 %v62
    %566 = vmatprep.subr.mxu0 0.0
    %567 = vmatpush1.msra.mxu0 %v61
    %568 = vmatprep.subr.mxu0 0.0
    %569 = vmatpush1.msra.mxu0 %v60
    %570 = vmatprep.subr.mxu0 0.0
    %571 = vmatpush1.msra.mxu0 %v59
    %572 = vmatprep.subr.mxu0 0.0
    %573 = vmatpush1.msra.mxu0 %v58
    %574 = vmatprep.subr.mxu0 0.0
    %575 = vmatpush1.msra.mxu0 %v57
    %576 = vmatprep.subr.mxu0 0.0
    %577 = vmatpush1.msra.mxu0 %v56
    %578 = vmatprep.subr.mxu0 0.0
    %579 = vmatpush2.msra.mxu0 %v87
    %580 = vmatprep.subr.mxu0 0.0
    %581 = vmatpush2.msra.mxu0 %v86
    %582 = vmatprep.subr.mxu0 0.0
    %583 = vmatpush2.msra.mxu0 %v85
    %584 = vmatprep.subr.mxu0 0.0
    %585 = vmatpush2.msra.mxu0 %v84
    %586 = vmatprep.subr.mxu0 0.0
    %587 = vmatpush2.msra.mxu0 %v83
    %588 = vmatprep.subr.mxu0 0.0
    %589 = vmatpush2.msra.mxu0 %v82
    %590 = vmatprep.subr.mxu0 0.0
    %591 = vmatpush2.msra.mxu0 %v81
    %592 = vmatprep.subr.mxu0 0.0
    %593 = vmatpush2.msra.mxu0 %v80
    %594 = vmatprep.subr.mxu0 0.0
    %595 = vmatpush2.msra.mxu0 %v79
    %596 = vmatprep.subr.mxu0 0.0
    %597 = vmatpush2.msra.mxu0 %v78
    %598 = vmatprep.subr.mxu0 0.0
    %599 = vmatpush2.msra.mxu0 %v77
    %600 = vmatprep.subr.mxu0 0.0
    %601 = vmatpush2.msra.mxu0 %v76
    %602 = vmatprep.subr.mxu0 0.0
    %603 = vmatpush2.msra.mxu0 %v75
    %604 = vmatprep.subr.mxu0 0.0
    %605 = vmatpush2.msra.mxu0 %v74
    %606 = vmatprep.subr.mxu0 0.0
    %607 = vmatpush2.msra.mxu0 %v73
    %608 = vmatprep.subr.mxu0 0.0
    %609 = vmatpush2.msra.mxu0 %v72
    %610 = vmatprep.mubr.f32.mxu0 %v541
    %611 = vmatmul.mubr.f32.gmra.mxu0 %v545
    %v612 = vpop.f32.mrf.mxu0
    %v613 = vadd.f32 %v93, %v612
    %v614 = vpop.f32.mrf.mxu0
    %615 = vdwg.mxu0
    %v616 = vtanh.pop %v613
    %s617 = scalar_lea.vmem %s5, 48
    %618 = vst [vmem:[%s617] sm:$0xff] %v616
    %s619 = scalar_lea.vmem %s0, 56
    %v620 = vld [vmem:[%s619] sm:$0xff]
    %621 = vmatprep.subr.mxu0 0.0
    %622 = vmatpush1.msra.mxu0 %v71
    %623 = vmatprep.subr.mxu0 0.0
    %624 = vmatpush1.msra.mxu0 %v70
    %625 = vmatprep.subr.mxu0 0.0
    %626 = vmatpush1.msra.mxu0 %v69
    %627 = vmatprep.subr.mxu0 0.0
    %628 = vmatpush1.msra.mxu0 %v68
    %629 = vmatprep.subr.mxu0 0.0
    %630 = vmatpush1.msra.mxu0 %v67
    %631 = vmatprep.subr.mxu0 0.0
    %632 = vmatpush1.msra.mxu0 %v66
    %633 = vmatprep.subr.mxu0 0.0
    %634 = vmatpush1.msra.mxu0 %v65
    %635 = vmatprep.subr.mxu0 0.0
    %636 = vmatpush1.msra.mxu0 %v64
    %637 = vmatprep.subr.mxu0 0.0
    %638 = vmatpush1.msra.mxu0 %v63
    %639 = vmatprep.subr.mxu0 0.0
    %640 = vmatpush1.msra.mxu0 %v62
    %641 = vmatprep.subr.mxu0 0.0
    %642 = vmatpush1.msra.mxu0 %v61
    %643 = vmatprep.subr.mxu0 0.0
    %644 = vmatpush1.msra.mxu0 %v60
    %645 = vmatprep.subr.mxu0 0.0
    %646 = vmatpush1.msra.mxu0 %v59
    %647 = vmatprep.subr.mxu0 0.0
    %648 = vmatpush1.msra.mxu0 %v58
    %649 = vmatprep.subr.mxu0 0.0
    %650 = vmatpush1.msra.mxu0 %v57
    %651 = vmatprep.subr.mxu0 0.0
    %652 = vmatpush1.msra.mxu0 %v56
    %653 = vmatprep.subr.mxu0 0.0
    %654 = vmatpush2.msra.mxu0 %v87
    %655 = vmatprep.subr.mxu0 0.0
    %656 = vmatpush2.msra.mxu0 %v86
    %657 = vmatprep.subr.mxu0 0.0
    %658 = vmatpush2.msra.mxu0 %v85
    %659 = vmatprep.subr.mxu0 0.0
    %660 = vmatpush2.msra.mxu0 %v84
    %661 = vmatprep.subr.mxu0 0.0
    %662 = vmatpush2.msra.mxu0 %v83
    %663 = vmatprep.subr.mxu0 0.0
    %664 = vmatpush2.msra.mxu0 %v82
    %665 = vmatprep.subr.mxu0 0.0
    %666 = vmatpush2.msra.mxu0 %v81
    %667 = vmatprep.subr.mxu0 0.0
    %668 = vmatpush2.msra.mxu0 %v80
    %669 = vmatprep.subr.mxu0 0.0
    %670 = vmatpush2.msra.mxu0 %v79
    %671 = vmatprep.subr.mxu0 0.0
    %672 = vmatpush2.msra.mxu0 %v78
    %673 = vmatprep.subr.mxu0 0.0
    %674 = vmatpush2.msra.mxu0 %v77
    %675 = vmatprep.subr.mxu0 0.0
    %676 = vmatpush2.msra.mxu0 %v76
    %677 = vmatprep.subr.mxu0 0.0
    %678 = vmatpush2.msra.mxu0 %v75
    %679 = vmatprep.subr.mxu0 0.0
    %680 = vmatpush2.msra.mxu0 %v74
    %681 = vmatprep.subr.mxu0 0.0
    %682 = vmatpush2.msra.mxu0 %v73
    %683 = vmatprep.subr.mxu0 0.0
    %684 = vmatpush2.msra.mxu0 %v72
    %685 = vmatprep.mubr.f32.mxu0 %v616
    %686 = vmatmul.mubr.f32.gmra.mxu0 %v620
    %v687 = vpop.f32.mrf.mxu0
    %v688 = vadd.f32 %v93, %v687
    %v689 = vpop.f32.mrf.mxu0
    %690 = vdwg.mxu0
    %v691 = vtanh.pop %v688
    %s692 = scalar_lea.vmem %s5, 56
    %693 = vst [vmem:[%s692] sm:$0xff] %v691
    %694 = vst [vmem:[#allocation2] sm:$0xff] %v691
    %s695 = scalar_lea.vmem [#allocation3], 256
    %v696 = vld [vmem:[%s695] sm:$0xff]
    %v697 = vld [vmem:[%s695 + $0x8] sm:$0xff]
    %v698 = vld [vmem:[%s695 + $0x10] sm:$0xff]
    %v699 = vld [vmem:[%s695 + $0x18] sm:$0xff]
    %v700 = vld [vmem:[%s695 + $0x20] sm:$0xff]
    %v701 = vld [vmem:[%s695 + $0x28] sm:$0xff]
    %v702 = vld [vmem:[%s695 + $0x30] sm:$0xff]
    %v703 = vld [vmem:[%s695 + $0x38] sm:$0xff]
    %v704 = vld [vmem:[%s695 + $0x40] sm:$0xff]
    %v705 = vld [vmem:[%s695 + $0x48] sm:$0xff]
    %v706 = vld [vmem:[%s695 + $0x50] sm:$0xff]
    %v707 = vld [vmem:[%s695 + $0x58] sm:$0xff]
    %v708 = vld [vmem:[%s695 + $0x60] sm:$0xff]
    %v709 = vld [vmem:[%s695 + $0x68] sm:$0xff]
    %v710 = vld [vmem:[%s695 + $0x70] sm:$0xff]
    %v711 = vld [vmem:[%s695 + $0x78] sm:$0xff]
    %v712 = vld [vmem:[%s695 + $0x80] sm:$0xff]
    %v713 = vld [vmem:[%s695 + $0x88] sm:$0xff]
    %v714 = vld [vmem:[%s695 + $0x90] sm:$0xff]
    %v715 = vld [vmem:[%s695 + $0x98] sm:$0xff]
    %v716 = vld [vmem:[%s695 + $0xa0] sm:$0xff]
    %v717 = vld [vmem:[%s695 + $0xa8] sm:$0xff]
    %v718 = vld [vmem:[%s695 + $0xb0] sm:$0xff]
    %v719 = vld [vmem:[%s695 + $0xb8] sm:$0xff]
    %v720 = vld [vmem:[%s695 + $0xc0] sm:$0xff]
    %v721 = vld [vmem:[%s695 + $0xc8] sm:$0xff]
    %v722 = vld [vmem:[%s695 + $0xd0] sm:$0xff]
    %v723 = vld [vmem:[%s695 + $0xd8] sm:$0xff]
    %v724 = vld [vmem:[%s695 + $0xe0] sm:$0xff]
    %v725 = vld [vmem:[%s695 + $0xe8] sm:$0xff]
    %v726 = vld [vmem:[%s695 + $0xf0] sm:$0xff]
    %v727 = vld [vmem:[%s695 + $0xf8] sm:$0xff]
    %s728 = scalar_lea.vmem %s2, 1
    %v729 = vld [vmem:[%s728] sm:$0x1]
    %v731 = vlaneseq
    %v732 = vshrl.u32 %v731, 7
    %v733 = vsub.s32 0, %v732
    %v734 = vrot.slane %v729, %v733
    %s736 = scalar_lea.vmem [#allocation2], 8
    %v737 = vld [vmem:[%s736] sm:$0xff]
    %v738 = vld [vmem:[%s5] sm:$0xff]
    %739 = vmatprep.subr.mxu0 0.0
    %740 = vmatpush1.msra.mxu0 %v711
    %741 = vmatprep.subr.mxu0 0.0
    %742 = vmatpush1.msra.mxu0 %v710
    %743 = vmatprep.subr.mxu0 0.0
    %744 = vmatpush1.msra.mxu0 %v709
    %745 = vmatprep.subr.mxu0 0.0
    %746 = vmatpush1.msra.mxu0 %v708
    %747 = vmatprep.subr.mxu0 0.0
    %748 = vmatpush1.msra.mxu0 %v707
    %749 = vmatprep.subr.mxu0 0.0
    %750 = vmatpush1.msra.mxu0 %v706
    %751 = vmatprep.subr.mxu0 0.0
    %752 = vmatpush1.msra.mxu0 %v705
    %753 = vmatprep.subr.mxu0 0.0
    %754 = vmatpush1.msra.mxu0 %v704
    %755 = vmatprep.subr.mxu0 0.0
    %756 = vmatpush1.msra.mxu0 %v703
    %757 = vmatprep.subr.mxu0 0.0
    %758 = vmatpush1.msra.mxu0 %v702
    %759 = vmatprep.subr.mxu0 0.0
    %760 = vmatpush1.msra.mxu0 %v701
    %761 = vmatprep.subr.mxu0 0.0
    %762 = vmatpush1.msra.mxu0 %v700
    %763 = vmatprep.subr.mxu0 0.0
    %764 = vmatpush1.msra.mxu0 %v699
    %765 = vmatprep.subr.mxu0 0.0
    %766 = vmatpush1.msra.mxu0 %v698
    %767 = vmatprep.subr.mxu0 0.0
    %768 = vmatpush1.msra.mxu0 %v697
    %769 = vmatprep.subr.mxu0 0.0
    %770 = vmatpush1.msra.mxu0 %v696
    %771 = vmatprep.subr.mxu0 0.0
    %772 = vmatpush2.msra.mxu0 %v727
    %773 = vmatprep.subr.mxu0 0.0
    %774 = vmatpush2.msra.mxu0 %v726
    %775 = vmatprep.subr.mxu0 0.0
    %776 = vmatpush2.msra.mxu0 %v725
    %777 = vmatprep.subr.mxu0 0.0
    %778 = vmatpush2.msra.mxu0 %v724
    %779 = vmatprep.subr.mxu0 0.0
    %780 = vmatpush2.msra.mxu0 %v723
    %781 = vmatprep.subr.mxu0 0.0
    %782 = vmatpush2.msra.mxu0 %v722
    %783 = vmatprep.subr.mxu0 0.0
    %784 = vmatpush2.msra.mxu0 %v721
    %785 = vmatprep.subr.mxu0 0.0
    %786 = vmatpush2.msra.mxu0 %v720
    %787 = vmatprep.subr.mxu0 0.0
    %788 = vmatpush2.msra.mxu0 %v719
    %789 = vmatprep.subr.mxu0 0.0
    %790 = vmatpush2.msra.mxu0 %v718
    %791 = vmatprep.subr.mxu0 0.0
    %792 = vmatpush2.msra.mxu0 %v717
    %793 = vmatprep.subr.mxu0 0.0
    %794 = vmatpush2.msra.mxu0 %v716
    %795 = vmatprep.subr.mxu0 0.0
    %796 = vmatpush2.msra.mxu0 %v715
    %797 = vmatprep.subr.mxu0 0.0
    %798 = vmatpush2.msra.mxu0 %v714
    %799 = vmatprep.subr.mxu0 0.0
    %800 = vmatpush2.msra.mxu0 %v713
    %801 = vmatprep.subr.mxu0 0.0
    %802 = vmatpush2.msra.mxu0 %v712
    %803 = vmatprep.mubr.f32.mxu0 %v737
    %804 = vmatmul.mubr.f32.gmra.mxu0 %v738
    %v805 = vpop.f32.mrf.mxu0
    %v806 = vadd.f32 %v734, %v805
    %v807 = vpop.f32.mrf.mxu0
    %808 = vdwg.mxu0
    %v809 = vtanh.pop %v806
    %s810 = scalar_lea.vmem %s5, 64
    %811 = vst [vmem:[%s810] sm:$0xff] %v809
    %v812 = vld [vmem:[%s242] sm:$0xff]
    %813 = vmatprep.subr.mxu0 0.0
    %814 = vmatpush1.msra.mxu0 %v711
    %815 = vmatprep.subr.mxu0 0.0
    %816 = vmatpush1.msra.mxu0 %v710
    %817 = vmatprep.subr.mxu0 0.0
    %818 = vmatpush1.msra.mxu0 %v709
    %819 = vmatprep.subr.mxu0 0.0
    %820 = vmatpush1.msra.mxu0 %v708
    %821 = vmatprep.subr.mxu0 0.0
    %822 = vmatpush1.msra.mxu0 %v707
    %823 = vmatprep.subr.mxu0 0.0
    %824 = vmatpush1.msra.mxu0 %v706
    %825 = vmatprep.subr.mxu0 0.0
    %826 = vmatpush1.msra.mxu0 %v705
    %827 = vmatprep.subr.mxu0 0.0
    %828 = vmatpush1.msra.mxu0 %v704
    %829 = vmatprep.subr.mxu0 0.0
    %830 = vmatpush1.msra.mxu0 %v703
    %831 = vmatprep.subr.mxu0 0.0
    %832 = vmatpush1.msra.mxu0 %v702
    %833 = vmatprep.subr.mxu0 0.0
    %834 = vmatpush1.msra.mxu0 %v701
    %835 = vmatprep.subr.mxu0 0.0
    %836 = vmatpush1.msra.mxu0 %v700
    %837 = vmatprep.subr.mxu0 0.0
    %838 = vmatpush1.msra.mxu0 %v699
    %839 = vmatprep.subr.mxu0 0.0
    %840 = vmatpush1.msra.mxu0 %v698
    %841 = vmatprep.subr.mxu0 0.0
    %842 = vmatpush1.msra.mxu0 %v697
    %843 = vmatprep.subr.mxu0 0.0
    %844 = vmatpush1.msra.mxu0 %v696
    %845 = vmatprep.subr.mxu0 0.0
    %846 = vmatpush2.msra.mxu0 %v727
    %847 = vmatprep.subr.mxu0 0.0
    %848 = vmatpush2.msra.mxu0 %v726
    %849 = vmatprep.subr.mxu0 0.0
    %850 = vmatpush2.msra.mxu0 %v725
    %851 = vmatprep.subr.mxu0 0.0
    %852 = vmatpush2.msra.mxu0 %v724
    %853 = vmatprep.subr.mxu0 0.0
    %854 = vmatpush2.msra.mxu0 %v723
    %855 = vmatprep.subr.mxu0 0.0
    %856 = vmatpush2.msra.mxu0 %v722
    %857 = vmatprep.subr.mxu0 0.0
    %858 = vmatpush2.msra.mxu0 %v721
    %859 = vmatprep.subr.mxu0 0.0
    %860 = vmatpush2.msra.mxu0 %v720
    %861 = vmatprep.subr.mxu0 0.0
    %862 = vmatpush2.msra.mxu0 %v719
    %863 = vmatprep.subr.mxu0 0.0
    %864 = vmatpush2.msra.mxu0 %v718
    %865 = vmatprep.subr.mxu0 0.0
    %866 = vmatpush2.msra.mxu0 %v717
    %867 = vmatprep.subr.mxu0 0.0
    %868 = vmatpush2.msra.mxu0 %v716
    %869 = vmatprep.subr.mxu0 0.0
    %870 = vmatpush2.msra.mxu0 %v715
    %871 = vmatprep.subr.mxu0 0.0
    %872 = vmatpush2.msra.mxu0 %v714
    %873 = vmatprep.subr.mxu0 0.0
    %874 = vmatpush2.msra.mxu0 %v713
    %875 = vmatprep.subr.mxu0 0.0
    %876 = vmatpush2.msra.mxu0 %v712
    %877 = vmatprep.mubr.f32.mxu0 %v809
    %878 = vmatmul.mubr.f32.gmra.mxu0 %v812
    %v879 = vpop.f32.mrf.mxu0
    %v880 = vadd.f32 %v734, %v879
    %v881 = vpop.f32.mrf.mxu0
    %882 = vdwg.mxu0
    %v883 = vtanh.pop %v880
    %s884 = scalar_lea.vmem %s5, 72
    %885 = vst [vmem:[%s884] sm:$0xff] %v883
    %v886 = vld [vmem:[%s317] sm:$0xff]
    %887 = vmatprep.subr.mxu0 0.0
    %888 = vmatpush1.msra.mxu0 %v711
    %889 = vmatprep.subr.mxu0 0.0
    %890 = vmatpush1.msra.mxu0 %v710
    %891 = vmatprep.subr.mxu0 0.0
    %892 = vmatpush1.msra.mxu0 %v709
    %893 = vmatprep.subr.mxu0 0.0
    %894 = vmatpush1.msra.mxu0 %v708
    %895 = vmatprep.subr.mxu0 0.0
    %896 = vmatpush1.msra.mxu0 %v707
    %897 = vmatprep.subr.mxu0 0.0
    %898 = vmatpush1.msra.mxu0 %v706
    %899 = vmatprep.subr.mxu0 0.0
    %900 = vmatpush1.msra.mxu0 %v705
    %901 = vmatprep.subr.mxu0 0.0
    %902 = vmatpush1.msra.mxu0 %v704
    %903 = vmatprep.subr.mxu0 0.0
    %904 = vmatpush1.msra.mxu0 %v703
    %905 = vmatprep.subr.mxu0 0.0
    %906 = vmatpush1.msra.mxu0 %v702
    %907 = vmatprep.subr.mxu0 0.0
    %908 = vmatpush1.msra.mxu0 %v701
    %909 = vmatprep.subr.mxu0 0.0
    %910 = vmatpush1.msra.mxu0 %v700
    %911 = vmatprep.subr.mxu0 0.0
    %912 = vmatpush1.msra.mxu0 %v699
    %913 = vmatprep.subr.mxu0 0.0
    %914 = vmatpush1.msra.mxu0 %v698
    %915 = vmatprep.subr.mxu0 0.0
    %916 = vmatpush1.msra.mxu0 %v697
    %917 = vmatprep.subr.mxu0 0.0
    %918 = vmatpush1.msra.mxu0 %v696
    %919 = vmatprep.subr.mxu0 0.0
    %920 = vmatpush2.msra.mxu0 %v727
    %921 = vmatprep.subr.mxu0 0.0
    %922 = vmatpush2.msra.mxu0 %v726
    %923 = vmatprep.subr.mxu0 0.0
    %924 = vmatpush2.msra.mxu0 %v725
    %925 = vmatprep.subr.mxu0 0.0
    %926 = vmatpush2.msra.mxu0 %v724
    %927 = vmatprep.subr.mxu0 0.0
    %928 = vmatpush2.msra.mxu0 %v723
    %929 = vmatprep.subr.mxu0 0.0
    %930 = vmatpush2.msra.mxu0 %v722
    %931 = vmatprep.subr.mxu0 0.0
    %932 = vmatpush2.msra.mxu0 %v721
    %933 = vmatprep.subr.mxu0 0.0
    %934 = vmatpush2.msra.mxu0 %v720
    %935 = vmatprep.subr.mxu0 0.0
    %936 = vmatpush2.msra.mxu0 %v719
    %937 = vmatprep.subr.mxu0 0.0
    %938 = vmatpush2.msra.mxu0 %v718
    %939 = vmatprep.subr.mxu0 0.0
    %940 = vmatpush2.msra.mxu0 %v717
    %941 = vmatprep.subr.mxu0 0.0
    %942 = vmatpush2.msra.mxu0 %v716
    %943 = vmatprep.subr.mxu0 0.0
    %944 = vmatpush2.msra.mxu0 %v715
    %945 = vmatprep.subr.mxu0 0.0
    %946 = vmatpush2.msra.mxu0 %v714
    %947 = vmatprep.subr.mxu0 0.0
    %948 = vmatpush2.msra.mxu0 %v713
    %949 = vmatprep.subr.mxu0 0.0
    %950 = vmatpush2.msra.mxu0 %v712
    %951 = vmatprep.mubr.f32.mxu0 %v883
    %952 = vmatmul.mubr.f32.gmra.mxu0 %v886
    %v953 = vpop.f32.mrf.mxu0
    %v954 = vadd.f32 %v734, %v953
    %v955 = vpop.f32.mrf.mxu0
    %956 = vdwg.mxu0
    %v957 = vtanh.pop %v954
    %s958 = scalar_lea.vmem %s5, 80
    %959 = vst [vmem:[%s958] sm:$0xff] %v957
    %v960 = vld [vmem:[%s392] sm:$0xff]
    %961 = vmatprep.subr.mxu0 0.0
    %962 = vmatpush1.msra.mxu0 %v711
    %963 = vmatprep.subr.mxu0 0.0
    %964 = vmatpush1.msra.mxu0 %v710
    %965 = vmatprep.subr.mxu0 0.0
    %966 = vmatpush1.msra.mxu0 %v709
    %967 = vmatprep.subr.mxu0 0.0
    %968 = vmatpush1.msra.mxu0 %v708
    %969 = vmatprep.subr.mxu0 0.0
    %970 = vmatpush1.msra.mxu0 %v707
    %971 = vmatprep.subr.mxu0 0.0
    %972 = vmatpush1.msra.mxu0 %v706
    %973 = vmatprep.subr.mxu0 0.0
    %974 = vmatpush1.msra.mxu0 %v705
    %975 = vmatprep.subr.mxu0 0.0
    %976 = vmatpush1.msra.mxu0 %v704
    %977 = vmatprep.subr.mxu0 0.0
    %978 = vmatpush1.msra.mxu0 %v703
    %979 = vmatprep.subr.mxu0 0.0
    %980 = vmatpush1.msra.mxu0 %v702
    %981 = vmatprep.subr.mxu0 0.0
    %982 = vmatpush1.msra.mxu0 %v701
    %983 = vmatprep.subr.mxu0 0.0
    %984 = vmatpush1.msra.mxu0 %v700
    %985 = vmatprep.subr.mxu0 0.0
    %986 = vmatpush1.msra.mxu0 %v699
    %987 = vmatprep.subr.mxu0 0.0
    %988 = vmatpush1.msra.mxu0 %v698
    %989 = vmatprep.subr.mxu0 0.0
    %990 = vmatpush1.msra.mxu0 %v697
    %991 = vmatprep.subr.mxu0 0.0
    %992 = vmatpush1.msra.mxu0 %v696
    %993 = vmatprep.subr.mxu0 0.0
    %994 = vmatpush2.msra.mxu0 %v727
    %995 = vmatprep.subr.mxu0 0.0
    %996 = vmatpush2.msra.mxu0 %v726
    %997 = vmatprep.subr.mxu0 0.0
    %998 = vmatpush2.msra.mxu0 %v725
    %999 = vmatprep.subr.mxu0 0.0
    %1000 = vmatpush2.msra.mxu0 %v724
    %1001 = vmatprep.subr.mxu0 0.0
    %1002 = vmatpush2.msra.mxu0 %v723
    %1003 = vmatprep.subr.mxu0 0.0
    %1004 = vmatpush2.msra.mxu0 %v722
    %1005 = vmatprep.subr.mxu0 0.0
    %1006 = vmatpush2.msra.mxu0 %v721
    %1007 = vmatprep.subr.mxu0 0.0
    %1008 = vmatpush2.msra.mxu0 %v720
    %1009 = vmatprep.subr.mxu0 0.0
    %1010 = vmatpush2.msra.mxu0 %v719
    %1011 = vmatprep.subr.mxu0 0.0
    %1012 = vmatpush2.msra.mxu0 %v718
    %1013 = vmatprep.subr.mxu0 0.0
    %1014 = vmatpush2.msra.mxu0 %v717
    %1015 = vmatprep.subr.mxu0 0.0
    %1016 = vmatpush2.msra.mxu0 %v716
    %1017 = vmatprep.subr.mxu0 0.0
    %1018 = vmatpush2.msra.mxu0 %v715
    %1019 = vmatprep.subr.mxu0 0.0
    %1020 = vmatpush2.msra.mxu0 %v714
    %1021 = vmatprep.subr.mxu0 0.0
    %1022 = vmatpush2.msra.mxu0 %v713
    %1023 = vmatprep.subr.mxu0 0.0
    %1024 = vmatpush2.msra.mxu0 %v712
    %1025 = vmatprep.mubr.f32.mxu0 %v957
    %1026 = vmatmul.mubr.f32.gmra.mxu0 %v960
    %v1027 = vpop.f32.mrf.mxu0
    %v1028 = vadd.f32 %v734, %v1027
    %v1029 = vpop.f32.mrf.mxu0
    %1030 = vdwg.mxu0
    %v1031 = vtanh.pop %v1028
    %s1032 = scalar_lea.vmem %s5, 88
    %1033 = vst [vmem:[%s1032] sm:$0xff] %v1031
    %v1034 = vld [vmem:[%s467] sm:$0xff]
    %1035 = vmatprep.subr.mxu0 0.0
    %1036 = vmatpush1.msra.mxu0 %v711
    %1037 = vmatprep.subr.mxu0 0.0
    %1038 = vmatpush1.msra.mxu0 %v710
    %1039 = vmatprep.subr.mxu0 0.0
    %1040 = vmatpush1.msra.mxu0 %v709
    %1041 = vmatprep.subr.mxu0 0.0
    %1042 = vmatpush1.msra.mxu0 %v708
    %1043 = vmatprep.subr.mxu0 0.0
    %1044 = vmatpush1.msra.mxu0 %v707
    %1045 = vmatprep.subr.mxu0 0.0
    %1046 = vmatpush1.msra.mxu0 %v706
    %1047 = vmatprep.subr.mxu0 0.0
    %1048 = vmatpush1.msra.mxu0 %v705
    %1049 = vmatprep.subr.mxu0 0.0
    %1050 = vmatpush1.msra.mxu0 %v704
    %1051 = vmatprep.subr.mxu0 0.0
    %1052 = vmatpush1.msra.mxu0 %v703
    %1053 = vmatprep.subr.mxu0 0.0
    %1054 = vmatpush1.msra.mxu0 %v702
    %1055 = vmatprep.subr.mxu0 0.0
    %1056 = vmatpush1.msra.mxu0 %v701
    %1057 = vmatprep.subr.mxu0 0.0
    %1058 = vmatpush1.msra.mxu0 %v700
    %1059 = vmatprep.subr.mxu0 0.0
    %1060 = vmatpush1.msra.mxu0 %v699
    %1061 = vmatprep.subr.mxu0 0.0
    %1062 = vmatpush1.msra.mxu0 %v698
    %1063 = vmatprep.subr.mxu0 0.0
    %1064 = vmatpush1.msra.mxu0 %v697
    %1065 = vmatprep.subr.mxu0 0.0
    %1066 = vmatpush1.msra.mxu0 %v696
    %1067 = vmatprep.subr.mxu0 0.0
    %1068 = vmatpush2.msra.mxu0 %v727
    %1069 = vmatprep.subr.mxu0 0.0
    %1070 = vmatpush2.msra.mxu0 %v726
    %1071 = vmatprep.subr.mxu0 0.0
    %1072 = vmatpush2.msra.mxu0 %v725
    %1073 = vmatprep.subr.mxu0 0.0
    %1074 = vmatpush2.msra.mxu0 %v724
    %1075 = vmatprep.subr.mxu0 0.0
    %1076 = vmatpush2.msra.mxu0 %v723
    %1077 = vmatprep.subr.mxu0 0.0
    %1078 = vmatpush2.msra.mxu0 %v722
    %1079 = vmatprep.subr.mxu0 0.0
    %1080 = vmatpush2.msra.mxu0 %v721
    %1081 = vmatprep.subr.mxu0 0.0
    %1082 = vmatpush2.msra.mxu0 %v720
    %1083 = vmatprep.subr.mxu0 0.0
    %1084 = vmatpush2.msra.mxu0 %v719
    %1085 = vmatprep.subr.mxu0 0.0
    %1086 = vmatpush2.msra.mxu0 %v718
    %1087 = vmatprep.subr.mxu0 0.0
    %1088 = vmatpush2.msra.mxu0 %v717
    %1089 = vmatprep.subr.mxu0 0.0
    %1090 = vmatpush2.msra.mxu0 %v716
    %1091 = vmatprep.subr.mxu0 0.0
    %1092 = vmatpush2.msra.mxu0 %v715
    %1093 = vmatprep.subr.mxu0 0.0
    %1094 = vmatpush2.msra.mxu0 %v714
    %1095 = vmatprep.subr.mxu0 0.0
    %1096 = vmatpush2.msra.mxu0 %v713
    %1097 = vmatprep.subr.mxu0 0.0
    %1098 = vmatpush2.msra.mxu0 %v712
    %1099 = vmatprep.mubr.f32.mxu0 %v1031
    %1100 = vmatmul.mubr.f32.gmra.mxu0 %v1034
    %v1101 = vpop.f32.mrf.mxu0
    %v1102 = vadd.f32 %v734, %v1101
    %v1103 = vpop.f32.mrf.mxu0
    %1104 = vdwg.mxu0
    %v1105 = vtanh.pop %v1102
    %s1106 = scalar_lea.vmem %s5, 96
    %1107 = vst [vmem:[%s1106] sm:$0xff] %v1105
    %v1108 = vld [vmem:[%s542] sm:$0xff]
    %1109 = vmatprep.subr.mxu0 0.0
    %1110 = vmatpush1.msra.mxu0 %v711
    %1111 = vmatprep.subr.mxu0 0.0
    %1112 = vmatpush1.msra.mxu0 %v710
    %1113 = vmatprep.subr.mxu0 0.0
    %1114 = vmatpush1.msra.mxu0 %v709
    %1115 = vmatprep.subr.mxu0 0.0
    %1116 = vmatpush1.msra.mxu0 %v708
    %1117 = vmatprep.subr.mxu0 0.0
    %1118 = vmatpush1.msra.mxu0 %v707
    %1119 = vmatprep.subr.mxu0 0.0
    %1120 = vmatpush1.msra.mxu0 %v706
    %1121 = vmatprep.subr.mxu0 0.0
    %1122 = vmatpush1.msra.mxu0 %v705
    %1123 = vmatprep.subr.mxu0 0.0
    %1124 = vmatpush1.msra.mxu0 %v704
    %1125 = vmatprep.subr.mxu0 0.0
    %1126 = vmatpush1.msra.mxu0 %v703
    %1127 = vmatprep.subr.mxu0 0.0
    %1128 = vmatpush1.msra.mxu0 %v702
    %1129 = vmatprep.subr.mxu0 0.0
    %1130 = vmatpush1.msra.mxu0 %v701
    %1131 = vmatprep.subr.mxu0 0.0
    %1132 = vmatpush1.msra.mxu0 %v700
    %1133 = vmatprep.subr.mxu0 0.0
    %1134 = vmatpush1.msra.mxu0 %v699
    %1135 = vmatprep.subr.mxu0 0.0
    %1136 = vmatpush1.msra.mxu0 %v698
    %1137 = vmatprep.subr.mxu0 0.0
    %1138 = vmatpush1.msra.mxu0 %v697
    %1139 = vmatprep.subr.mxu0 0.0
    %1140 = vmatpush1.msra.mxu0 %v696
    %1141 = vmatprep.subr.mxu0 0.0
    %1142 = vmatpush2.msra.mxu0 %v727
    %1143 = vmatprep.subr.mxu0 0.0
    %1144 = vmatpush2.msra.mxu0 %v726
    %1145 = vmatprep.subr.mxu0 0.0
    %1146 = vmatpush2.msra.mxu0 %v725
    %1147 = vmatprep.subr.mxu0 0.0
    %1148 = vmatpush2.msra.mxu0 %v724
    %1149 = vmatprep.subr.mxu0 0.0
    %1150 = vmatpush2.msra.mxu0 %v723
    %1151 = vmatprep.subr.mxu0 0.0
    %1152 = vmatpush2.msra.mxu0 %v722
    %1153 = vmatprep.subr.mxu0 0.0
    %1154 = vmatpush2.msra.mxu0 %v721
    %1155 = vmatprep.subr.mxu0 0.0
    %1156 = vmatpush2.msra.mxu0 %v720
    %1157 = vmatprep.subr.mxu0 0.0
    %1158 = vmatpush2.msra.mxu0 %v719
    %1159 = vmatprep.subr.mxu0 0.0
    %1160 = vmatpush2.msra.mxu0 %v718
    %1161 = vmatprep.subr.mxu0 0.0
    %1162 = vmatpush2.msra.mxu0 %v717
    %1163 = vmatprep.subr.mxu0 0.0
    %1164 = vmatpush2.msra.mxu0 %v716
    %1165 = vmatprep.subr.mxu0 0.0
    %1166 = vmatpush2.msra.mxu0 %v715
    %1167 = vmatprep.subr.mxu0 0.0
    %1168 = vmatpush2.msra.mxu0 %v714
    %1169 = vmatprep.subr.mxu0 0.0
    %1170 = vmatpush2.msra.mxu0 %v713
    %1171 = vmatprep.subr.mxu0 0.0
    %1172 = vmatpush2.msra.mxu0 %v712
    %1173 = vmatprep.mubr.f32.mxu0 %v1105
    %1174 = vmatmul.mubr.f32.gmra.mxu0 %v1108
    %v1175 = vpop.f32.mrf.mxu0
    %v1176 = vadd.f32 %v734, %v1175
    %v1177 = vpop.f32.mrf.mxu0
    %1178 = vdwg.mxu0
    %v1179 = vtanh.pop %v1176
    %s1180 = scalar_lea.vmem %s5, 104
    %1181 = vst [vmem:[%s1180] sm:$0xff] %v1179
    %v1182 = vld [vmem:[%s617] sm:$0xff]
    %1183 = vmatprep.subr.mxu0 0.0
    %1184 = vmatpush1.msra.mxu0 %v711
    %1185 = vmatprep.subr.mxu0 0.0
    %1186 = vmatpush1.msra.mxu0 %v710
    %1187 = vmatprep.subr.mxu0 0.0
    %1188 = vmatpush1.msra.mxu0 %v709
    %1189 = vmatprep.subr.mxu0 0.0
    %1190 = vmatpush1.msra.mxu0 %v708
    %1191 = vmatprep.subr.mxu0 0.0
    %1192 = vmatpush1.msra.mxu0 %v707
    %1193 = vmatprep.subr.mxu0 0.0
    %1194 = vmatpush1.msra.mxu0 %v706
    %1195 = vmatprep.subr.mxu0 0.0
    %1196 = vmatpush1.msra.mxu0 %v705
    %1197 = vmatprep.subr.mxu0 0.0
    %1198 = vmatpush1.msra.mxu0 %v704
    %1199 = vmatprep.subr.mxu0 0.0
    %1200 = vmatpush1.msra.mxu0 %v703
    %1201 = vmatprep.subr.mxu0 0.0
    %1202 = vmatpush1.msra.mxu0 %v702
    %1203 = vmatprep.subr.mxu0 0.0
    %1204 = vmatpush1.msra.mxu0 %v701
    %1205 = vmatprep.subr.mxu0 0.0
    %1206 = vmatpush1.msra.mxu0 %v700
    %1207 = vmatprep.subr.mxu0 0.0
    %1208 = vmatpush1.msra.mxu0 %v699
    %1209 = vmatprep.subr.mxu0 0.0
    %1210 = vmatpush1.msra.mxu0 %v698
    %1211 = vmatprep.subr.mxu0 0.0
    %1212 = vmatpush1.msra.mxu0 %v697
    %1213 = vmatprep.subr.mxu0 0.0
    %1214 = vmatpush1.msra.mxu0 %v696
    %1215 = vmatprep.subr.mxu0 0.0
    %1216 = vmatpush2.msra.mxu0 %v727
    %1217 = vmatprep.subr.mxu0 0.0
    %1218 = vmatpush2.msra.mxu0 %v726
    %1219 = vmatprep.subr.mxu0 0.0
    %1220 = vmatpush2.msra.mxu0 %v725
    %1221 = vmatprep.subr.mxu0 0.0
    %1222 = vmatpush2.msra.mxu0 %v724
    %1223 = vmatprep.subr.mxu0 0.0
    %1224 = vmatpush2.msra.mxu0 %v723
    %1225 = vmatprep.subr.mxu0 0.0
    %1226 = vmatpush2.msra.mxu0 %v722
    %1227 = vmatprep.subr.mxu0 0.0
    %1228 = vmatpush2.msra.mxu0 %v721
    %1229 = vmatprep.subr.mxu0 0.0
    %1230 = vmatpush2.msra.mxu0 %v720
    %1231 = vmatprep.subr.mxu0 0.0
    %1232 = vmatpush2.msra.mxu0 %v719
    %1233 = vmatprep.subr.mxu0 0.0
    %1234 = vmatpush2.msra.mxu0 %v718
    %1235 = vmatprep.subr.mxu0 0.0
    %1236 = vmatpush2.msra.mxu0 %v717
    %1237 = vmatprep.subr.mxu0 0.0
    %1238 = vmatpush2.msra.mxu0 %v716
    %1239 = vmatprep.subr.mxu0 0.0
    %1240 = vmatpush2.msra.mxu0 %v715
    %1241 = vmatprep.subr.mxu0 0.0
    %1242 = vmatpush2.msra.mxu0 %v714
    %1243 = vmatprep.subr.mxu0 0.0
    %1244 = vmatpush2.msra.mxu0 %v713
    %1245 = vmatprep.subr.mxu0 0.0
    %1246 = vmatpush2.msra.mxu0 %v712
    %1247 = vmatprep.mubr.f32.mxu0 %v1179
    %1248 = vmatmul.mubr.f32.gmra.mxu0 %v1182
    %v1249 = vpop.f32.mrf.mxu0
    %v1250 = vadd.f32 %v734, %v1249
    %v1251 = vpop.f32.mrf.mxu0
    %1252 = vdwg.mxu0
    %v1253 = vtanh.pop %v1250
    %s1254 = scalar_lea.vmem %s5, 112
    %1255 = vst [vmem:[%s1254] sm:$0xff] %v1253
    %v1256 = vld [vmem:[%s692] sm:$0xff]
    %1257 = vmatprep.subr.mxu0 0.0
    %1258 = vmatpush1.msra.mxu0 %v711
    %1259 = vmatprep.subr.mxu0 0.0
    %1260 = vmatpush1.msra.mxu0 %v710
    %1261 = vmatprep.subr.mxu0 0.0
    %1262 = vmatpush1.msra.mxu0 %v709
    %1263 = vmatprep.subr.mxu0 0.0
    %1264 = vmatpush1.msra.mxu0 %v708
    %1265 = vmatprep.subr.mxu0 0.0
    %1266 = vmatpush1.msra.mxu0 %v707
    %1267 = vmatprep.subr.mxu0 0.0
    %1268 = vmatpush1.msra.mxu0 %v706
    %1269 = vmatprep.subr.mxu0 0.0
    %1270 = vmatpush1.msra.mxu0 %v705
    %1271 = vmatprep.subr.mxu0 0.0
    %1272 = vmatpush1.msra.mxu0 %v704
    %1273 = vmatprep.subr.mxu0 0.0
    %1274 = vmatpush1.msra.mxu0 %v703
    %1275 = vmatprep.subr.mxu0 0.0
    %1276 = vmatpush1.msra.mxu0 %v702
    %1277 = vmatprep.subr.mxu0 0.0
    %1278 = vmatpush1.msra.mxu0 %v701
    %1279 = vmatprep.subr.mxu0 0.0
    %1280 = vmatpush1.msra.mxu0 %v700
    %1281 = vmatprep.subr.mxu0 0.0
    %1282 = vmatpush1.msra.mxu0 %v699
    %1283 = vmatprep.subr.mxu0 0.0
    %1284 = vmatpush1.msra.mxu0 %v698
    %1285 = vmatprep.subr.mxu0 0.0
    %1286 = vmatpush1.msra.mxu0 %v697
    %1287 = vmatprep.subr.mxu0 0.0
    %1288 = vmatpush1.msra.mxu0 %v696
    %1289 = vmatprep.subr.mxu0 0.0
    %1290 = vmatpush2.msra.mxu0 %v727
    %1291 = vmatprep.subr.mxu0 0.0
    %1292 = vmatpush2.msra.mxu0 %v726
    %1293 = vmatprep.subr.mxu0 0.0
    %1294 = vmatpush2.msra.mxu0 %v725
    %1295 = vmatprep.subr.mxu0 0.0
    %1296 = vmatpush2.msra.mxu0 %v724
    %1297 = vmatprep.subr.mxu0 0.0
    %1298 = vmatpush2.msra.mxu0 %v723
    %1299 = vmatprep.subr.mxu0 0.0
    %1300 = vmatpush2.msra.mxu0 %v722
    %1301 = vmatprep.subr.mxu0 0.0
    %1302 = vmatpush2.msra.mxu0 %v721
    %1303 = vmatprep.subr.mxu0 0.0
    %1304 = vmatpush2.msra.mxu0 %v720
    %1305 = vmatprep.subr.mxu0 0.0
    %1306 = vmatpush2.msra.mxu0 %v719
    %1307 = vmatprep.subr.mxu0 0.0
    %1308 = vmatpush2.msra.mxu0 %v718
    %1309 = vmatprep.subr.mxu0 0.0
    %1310 = vmatpush2.msra.mxu0 %v717
    %1311 = vmatprep.subr.mxu0 0.0
    %1312 = vmatpush2.msra.mxu0 %v716
    %1313 = vmatprep.subr.mxu0 0.0
    %1314 = vmatpush2.msra.mxu0 %v715
    %1315 = vmatprep.subr.mxu0 0.0
    %1316 = vmatpush2.msra.mxu0 %v714
    %1317 = vmatprep.subr.mxu0 0.0
    %1318 = vmatpush2.msra.mxu0 %v713
    %1319 = vmatprep.subr.mxu0 0.0
    %1320 = vmatpush2.msra.mxu0 %v712
    %1321 = vmatprep.mubr.f32.mxu0 %v1253
    %1322 = vmatmul.mubr.f32.gmra.mxu0 %v1256
    %v1323 = vpop.f32.mrf.mxu0
    %v1324 = vadd.f32 %v734, %v1323
    %v1325 = vpop.f32.mrf.mxu0
    %1326 = vdwg.mxu0
    %v1327 = vtanh.pop %v1324
    %s1328 = scalar_lea.vmem %s5, 120
    %1329 = vst [vmem:[%s1328] sm:$0xff] %v1327
    %1330 = vst [vmem:[%s736] sm:$0xff] %v1327
    %v1331 = vld [vmem:[%s810] sm:$0xff]
    %v1332 = vld [vmem:[%s810 + $0x8] sm:$0xff]
    %v1333 = vld [vmem:[%s810 + $0x10] sm:$0xff]
    %v1334 = vld [vmem:[%s810 + $0x18] sm:$0xff]
    %v1335 = vld [vmem:[%s810 + $0x20] sm:$0xff]
    %v1336 = vld [vmem:[%s810 + $0x28] sm:$0xff]
    %v1337 = vld [vmem:[%s810 + $0x30] sm:$0xff]
    %v1338 = vld [vmem:[%s810 + $0x38] sm:$0xff]
    %v1339 = vld [vmem:[#allocation5] sm:$0xff]
    %v1340 = vld [vmem:[#allocation5 + $0x8] sm:$0xff]
    %v1341 = vld [vmem:[#allocation5 + $0x10] sm:$0xff]
    %v1342 = vld [vmem:[#allocation5 + $0x18] sm:$0xff]
    %v1343 = vld [vmem:[#allocation5 + $0x20] sm:$0xff]
    %v1344 = vld [vmem:[#allocation5 + $0x28] sm:$0xff]
    %v1345 = vld [vmem:[#allocation5 + $0x30] sm:$0xff]
    %v1346 = vld [vmem:[#allocation5 + $0x38] sm:$0xff]
    %v1347 = vld [vmem:[#allocation5 + $0x40] sm:$0xff]
    %v1348 = vld [vmem:[#allocation5 + $0x48] sm:$0xff]
    %v1349 = vld [vmem:[#allocation5 + $0x50] sm:$0xff]
    %v1350 = vld [vmem:[#allocation5 + $0x58] sm:$0xff]
    %v1351 = vld [vmem:[#allocation5 + $0x60] sm:$0xff]
    %v1352 = vld [vmem:[#allocation5 + $0x68] sm:$0xff]
    %v1353 = vld [vmem:[#allocation5 + $0x70] sm:$0xff]
    %v1354 = vld [vmem:[#allocation5 + $0x78] sm:$0xff]
    %v1355 = vld [vmem:[%s4] sm:$0x1]
    %v1357 = vlaneseq
    %v1358 = vshrl.u32 %v1357, 7
    %v1359 = vsub.s32 0, %v1358
    %v1360 = vrot.slane %v1355, %v1359
    %1362 = vmatprep.subr.mxu0 0.0
    %1363 = vmatpush1.msra.mxu0 %v1354
    %1364 = vmatprep.subr.mxu0 0.0
    %1365 = vmatpush1.msra.mxu0 %v1353
    %1366 = vmatprep.subr.mxu0 0.0
    %1367 = vmatpush1.msra.mxu0 %v1352
    %1368 = vmatprep.subr.mxu0 0.0
    %1369 = vmatpush1.msra.mxu0 %v1351
    %1370 = vmatprep.subr.mxu0 0.0
    %1371 = vmatpush1.msra.mxu0 %v1350
    %1372 = vmatprep.subr.mxu0 0.0
    %1373 = vmatpush1.msra.mxu0 %v1349
    %1374 = vmatprep.subr.mxu0 0.0
    %1375 = vmatpush1.msra.mxu0 %v1348
    %1376 = vmatprep.subr.mxu0 0.0
    %1377 = vmatpush1.msra.mxu0 %v1347
    %1378 = vmatprep.subr.mxu0 0.0
    %1379 = vmatpush1.msra.mxu0 %v1346
    %1380 = vmatprep.subr.mxu0 0.0
    %1381 = vmatpush1.msra.mxu0 %v1345
    %1382 = vmatprep.subr.mxu0 0.0
    %1383 = vmatpush1.msra.mxu0 %v1344
    %1384 = vmatprep.subr.mxu0 0.0
    %1385 = vmatpush1.msra.mxu0 %v1343
    %1386 = vmatprep.subr.mxu0 0.0
    %1387 = vmatpush1.msra.mxu0 %v1342
    %1388 = vmatprep.subr.mxu0 0.0
    %1389 = vmatpush1.msra.mxu0 %v1341
    %1390 = vmatprep.subr.mxu0 0.0
    %1391 = vmatpush1.msra.mxu0 %v1340
    %1392 = vmatprep.subr.mxu0 0.0
    %1393 = vmatpush1.msra.mxu0 %v1339
    %1394 = vmatprep.subr.mxu0 0.0
    %1395 = vmatpush2.msra.mxu0 0.0
    %1396 = vmatprep.subr.mxu0 0.0
    %1397 = vmatpush2.msra.mxu0 0.0
    %1398 = vmatprep.subr.mxu0 0.0
    %1399 = vmatpush2.msra.mxu0 0.0
    %1400 = vmatprep.subr.mxu0 0.0
    %1401 = vmatpush2.msra.mxu0 0.0
    %1402 = vmatprep.subr.mxu0 0.0
    %1403 = vmatpush2.msra.mxu0 0.0
    %1404 = vmatprep.subr.mxu0 0.0
    %1405 = vmatpush2.msra.mxu0 0.0
    %1406 = vmatprep.subr.mxu0 0.0
    %1407 = vmatpush2.msra.mxu0 0.0
    %1408 = vmatprep.subr.mxu0 0.0
    %1409 = vmatpush2.msra.mxu0 0.0
    %1410 = vmatprep.subr.mxu0 0.0
    %1411 = vmatpush2.msra.mxu0 0.0
    %1412 = vmatprep.subr.mxu0 0.0
    %1413 = vmatpush2.msra.mxu0 0.0
    %1414 = vmatprep.subr.mxu0 0.0
    %1415 = vmatpush2.msra.mxu0 0.0
    %1416 = vmatprep.subr.mxu0 0.0
    %1417 = vmatpush2.msra.mxu0 0.0
    %1418 = vmatprep.subr.mxu0 0.0
    %1419 = vmatpush2.msra.mxu0 0.0
    %1420 = vmatprep.subr.mxu0 0.0
    %1421 = vmatpush2.msra.mxu0 0.0
    %1422 = vmatprep.subr.mxu0 0.0
    %1423 = vmatpush2.msra.mxu0 0.0
    %1424 = vmatprep.subr.mxu0 0.0
    %1425 = vmatpush2.msra.mxu0 0.0
    %1426 = vmatprep.mubr.f32.mxu0 0.0
    %1427 = vmatmul.mubr.f32.gmra.mxu0 %v1331
    %v1428 = vpop.f32.mrf.mxu0
    %v1429 = vadd.f32 %v1360, %v1428
    %v1430 = vpop.f32.mrf.mxu0
    %1431 = vmatprep.mubr.f32.mxu0 0.0
    %1432 = vmatmul.mubr.f32.gmra.mxu0 %v1332
    %v1433 = vpop.f32.mrf.mxu0
    %v1434 = vadd.f32 %v1360, %v1433
    %v1435 = vpop.f32.mrf.mxu0
    %1436 = vmatprep.mubr.f32.mxu0 0.0
    %1437 = vmatmul.mubr.f32.gmra.mxu0 %v1333
    %v1438 = vpop.f32.mrf.mxu0
    %v1439 = vadd.f32 %v1360, %v1438
    %v1440 = vpop.f32.mrf.mxu0
    %1441 = vmatprep.mubr.f32.mxu0 0.0
    %1442 = vmatmul.mubr.f32.gmra.mxu0 %v1334
    %v1443 = vpop.f32.mrf.mxu0
    %v1444 = vadd.f32 %v1360, %v1443
    %v1445 = vpop.f32.mrf.mxu0
    %1446 = vmatprep.mubr.f32.mxu0 0.0
    %1447 = vmatmul.mubr.f32.gmra.mxu0 %v1335
    %v1448 = vpop.f32.mrf.mxu0
    %v1449 = vadd.f32 %v1360, %v1448
    %v1450 = vpop.f32.mrf.mxu0
    %1451 = vmatprep.mubr.f32.mxu0 0.0
    %1452 = vmatmul.mubr.f32.gmra.mxu0 %v1336
    %v1453 = vpop.f32.mrf.mxu0
    %v1454 = vadd.f32 %v1360, %v1453
    %v1455 = vpop.f32.mrf.mxu0
    %1456 = vmatprep.mubr.f32.mxu0 0.0
    %1457 = vmatmul.mubr.f32.gmra.mxu0 %v1337
    %v1458 = vpop.f32.mrf.mxu0
    %v1459 = vadd.f32 %v1360, %v1458
    %v1460 = vpop.f32.mrf.mxu0
    %1461 = vmatprep.mubr.f32.mxu0 0.0
    %1462 = vmatmul.mubr.f32.gmra.mxu0 %v1338
    %v1463 = vpop.f32.mrf.mxu0
    %v1464 = vadd.f32 %v1360, %v1463
    %v1465 = vpop.f32.mrf.mxu0
    %1466 = vdwg.mxu0
    %1467 = vst [vmem:[%s6] sm:$0xff] %v1429
    %1468 = vst [vmem:[%s6 + $0x8] sm:$0xff] %v1434
    %1469 = vst [vmem:[%s6 + $0x10] sm:$0xff] %v1439
    %1470 = vst [vmem:[%s6 + $0x18] sm:$0xff] %v1444
    %1471 = vst [vmem:[%s6 + $0x20] sm:$0xff] %v1449
    %1472 = vst [vmem:[%s6 + $0x28] sm:$0xff] %v1454
    %1473 = vst [vmem:[%s6 + $0x30] sm:$0xff] %v1459
    %1474 = vst [vmem:[%s6 + $0x38] sm:$0xff] %v1464
    // Predicated region
    $region34: #{recurrent_network_forward.1} parent=1 // pred_check
      _
    $region35: #{recurrent_network_forward.1} parent=1 // pred_check_branch
      %1476 = sbr.rel (0) target = $region37
    $region36: #{recurrent_network_forward.1} parent=1 // pred_region
      _
    $region37: #{recurrent_network_forward.1} parent=1 // pred_fallthru
      _
    // Predicated region
    $region38: #{recurrent_network_forward.1} parent=1 // pred_check
      _
    $region39: #{recurrent_network_forward.1} parent=1 // pred_check_branch
      %1478 = sbr.rel (0) target = $region41
    $region40: #{recurrent_network_forward.1} parent=1 // pred_region
      _
    $region41: #{recurrent_network_forward.1} parent=1 // pred_fallthru
      _
    // Predicated region
    $region42: #{recurrent_network_forward.1} parent=1 // pred_check
      _
    $region43: #{recurrent_network_forward.1} parent=1 // pred_check_branch
      %1480 = sbr.rel (0) target = $region45
    $region44: #{recurrent_network_forward.1} parent=1 // pred_region
      _
    $region45: #{recurrent_network_forward.1} parent=1 // pred_fallthru
      _
    // Predicated region
    $region46: #{recurrent_network_forward.1} parent=1 // pred_check
      _
    $region47: #{recurrent_network_forward.1} parent=1 // pred_check_branch
      %1482 = sbr.rel (0) target = $region49
    $region48: #{recurrent_network_forward.1} parent=1 // pred_region
      _
    $region49: #{recurrent_network_forward.1} parent=1 // pred_fallthru
      _
    %1483 = vsyncpa [#allocation4], 1
    %1484 = vsyncpa [#allocation6], 1

</llo_original>
